<compile_context>
chip_gen: v7x
topology: tpu7x:2x2x1
jax: 0.10.0
libtpu: 0.0.40
codegen_flags: <defaults>
</compile_context>

<pallas_src>
import functools

import jax
import jax.numpy as jnp
from jax import lax
from jax.experimental import pallas as pl
from jax.experimental.pallas import tpu as pltpu

LANE = 128


# --------------------------------------------------------------------------- fused sequence layer
def _seq_layer_kernel(u_ref, lam_re_ref, lam_im_ref, wbr_ref, wbi_ref,
                      wcr_ref, wci_ref, wd_ref, *rest,
                      n_seq_lins, n_out_lins, skip_connection, use_bf16):
    n_lins = n_seq_lins + n_out_lins
    lin_refs = rest[:2 * n_lins]
    y_ref = rest[2 * n_lins]
    hc_re = rest[2 * n_lins + 1]          # (1, H) inter-chunk carry (persists over grid)
    hc_im = rest[2 * n_lins + 2]

    t_blk = u_ref.shape[0]
    H = lam_re_ref.shape[-1]
    mm_dtype = jnp.bfloat16 if use_bf16 else jnp.float32

    def mm(a, w):                          # MXU matmul, f32 accumulation
        return jnp.dot(a.astype(mm_dtype), w.astype(mm_dtype),
                       preferred_element_type=jnp.float32)

    c = pl.program_id(1)                   # time-chunk index (recurrence axis)

    @pl.when(c == 0)
    def _():                               # new batch element -> zero initial state
        hc_re[...] = jnp.zeros_like(hc_re)
        hc_im[...] = jnp.zeros_like(hc_im)

    u2 = u_ref[...]                        # (t_blk, d_in_p) float32
    lam_re = lam_re_ref[...]               # (1, H)
    lam_im = lam_im_ref[...]

    # ---- hoisted input projection: whole-chunk MXU matmuls -------------------
    b_re = mm(u2, wbr_ref[...])            # (t_blk, H)
    b_im = mm(u2, wbi_ref[...])

    # ---- fold inter-chunk carry into x_0:  x'_0 = x_0 + lambda * h_prev ------
    cr = hc_re[...]
    ci = hc_im[...]
    add_re = lam_re * cr - lam_im * ci     # (1, H)
    add_im = lam_re * ci + lam_im * cr
    row0 = lax.broadcasted_iota(jnp.int32, (t_blk, 1), 0) == 0
    b_re = jnp.where(row0, b_re + add_re, b_re)
    b_im = jnp.where(row0, b_im + add_im, b_im)

    # ---- block-parallel inclusive scan (Hillis-Steele) over the chunk --------
    # h_t = lambda*h_{t-1} + x_t is associative; each step combines with a
    # zero-filled sublane shift (zeros == identity for rows already complete)
    # using the lane-constant lambda^d, so only b_re/b_im stay live.
    pw_re, pw_im = lam_re, lam_im          # lambda^d, d starts at 1
    d = 1
    while d < t_blk:                       # static Python loop: ceil(log2(t_blk)) steps
        zpad = jnp.zeros((d, H), jnp.float32)
        s_re = jnp.concatenate([zpad, b_re[:t_blk - d, :]], axis=0)
        s_im = jnp.concatenate([zpad, b_im[:t_blk - d, :]], axis=0)
        b_re = b_re + (pw_re * s_re - pw_im * s_im)
        b_im = b_im + (pw_re * s_im + pw_im * s_re)
        nw_re = pw_re * pw_re - pw_im * pw_im    # lambda^{2d}
        nw_im = 2.0 * pw_re * pw_im
        pw_re, pw_im = nw_re, nw_im
        d *= 2

    # carry the last hidden state to the next time chunk
    hc_re[...] = b_re[t_blk - 1:t_blk, :]
    hc_im[...] = b_im[t_blk - 1:t_blk, :]

    # ---- hoisted output projection + feedthrough ------------------------------
    #   y = Re(h @ C^T) + u @ D^T = h_re @ C_re^T - h_im @ C_im^T + u @ D^T
    y = mm(b_re, wcr_ref[...]) + mm(b_im, wci_ref[...]) + mm(u2, wd_ref[...])

    # ---- fused Linear(+ReLU) stack: SequenceLayer linears ---------------------
    for i in range(n_seq_lins):
        w = lin_refs[2 * i][...]
        bias = lin_refs[2 * i + 1][...]
        y = mm(y, w) + bias
        if i < n_seq_lins - 1:
            y = jnp.maximum(y, 0.0)

    if skip_connection:
        y = y + u2

    # ---- fused output head (present only on the last sequence layer) ----------
    for j in range(n_out_lins):
        w = lin_refs[2 * (n_seq_lins + j)][...]
        bias = lin_refs[2 * (n_seq_lins + j) + 1][...]
        y = mm(y, w) + bias
        if j < n_out_lins - 1:
            y = jnp.maximum(y, 0.0)

    y_ref[...] = y.astype(y_ref.dtype)


def _pick_time_block(T, H, t_blk_max=256):
    # Biggest chunk up to t_blk_max, capped so the scan working set (a few
    # (t_blk, H) f32 tiles) stays modest; multiple of 8 sublanes when tiling.
    cap = min(t_blk_max, max(64, (1 << 15) // max(H, 1)))
    cap = max(8, (cap // 8) * 8)
    return T if T <= cap else cap


def sequence_layer_forward(u, layer_p, skip_connection=False, out_lins=(),
                           use_bf16=False, t_blk_max=256):
    """u: (B, T, d_in_p) f32 -> (B, T, d_out_p) f32. Lane dims pre-padded to 128."""
    lam_re, lam_im, wbr, wbi, wcr, wci, wd = layer_p["lru"]
    seq_lins = list(layer_p["linears"])
    out_lins = list(out_lins)
    lins = seq_lins + out_lins

    B, T, d_in = u.shape
    H = lam_re.shape[-1]
    d_out = lins[-1][0].shape[-1] if lins else wcr.shape[-1]
    if skip_connection:
        d_seq_out = seq_lins[-1][0].shape[-1] if seq_lins else wcr.shape[-1]
        assert d_seq_out == d_in, "skip connection requires d_in == d_out"

    t_blk = _pick_time_block(T, H, t_blk_max)
    n_chunks = pl.cdiv(T, t_blk)

    def const_spec(shape):                 # grid-constant block
        return pl.BlockSpec(shape, lambda b, c: (0,) * len(shape))

    in_specs = [pl.BlockSpec((None, t_blk, d_in), lambda b, c: (b, c, 0)),
                const_spec(lam_re.shape), const_spec(lam_im.shape),
                const_spec(wbr.shape), const_spec(wbi.shape),
                const_spec(wcr.shape), const_spec(wci.shape),
                const_spec(wd.shape)]
    args = [u, lam_re, lam_im, wbr, wbi, wcr, wci, wd]
    for (w, bias) in lins:
        in_specs += [const_spec(w.shape), const_spec(bias.shape)]
        args += [w, bias]

    # VMEM budget: double-buffered u/y tiles + grid-constant blocks (default
    # double-buffered) + scan working set; capped at 64 MiB (v7x-safe).
    # TODO(synk): single-buffer the grid-constant weights (pipeline_mode=
    #             pl.Buffered(1)) to reclaim VMEM on v7x once verified.
    tile_bytes = 4 * t_blk * (d_in + d_out) * 2
    w_bytes = 2 * sum(4 * int(a.size) for a in args[1:])
    scan_bytes = 4 * t_blk * H * 6
    vmem_bytes = int(min(max(tile_bytes + w_bytes + scan_bytes + (4 << 20),
                             16 << 20), 64 << 20))

    kernel = functools.partial(_seq_layer_kernel,
                               n_seq_lins=len(seq_lins),
                               n_out_lins=len(out_lins),
                               skip_connection=skip_connection,
                               use_bf16=use_bf16)

    return pl.pallas_call(
        kernel,
        out_shape=jax.ShapeDtypeStruct((B, T, d_out), jnp.float32),
        grid=(B, n_chunks),
        in_specs=in_specs,
        out_specs=pl.BlockSpec((None, t_blk, d_out), lambda b, c: (b, c, 0)),
        scratch_shapes=[pltpu.VMEM((1, H), jnp.float32),    # h_re carry
                        pltpu.VMEM((1, H), jnp.float32)],   # h_im carry
        compiler_params=pltpu.CompilerParams(
            # batch independent (2 TCs on v7x); time carries the recurrence
            dimension_semantics=("parallel", "arbitrary"),
            vmem_limit_bytes=vmem_bytes),
    )(*args)


# --------------------------------------------------------------------------- parameter init (lane-padded)
def _pad_lane(n):
    return ((n + LANE - 1) // LANE) * LANE


def _pad2(a, rows, cols):
    return jnp.pad(a, ((0, rows - a.shape[0]), (0, cols - a.shape[1])))


def _xavier_normal(key, shape):
    fan_out, fan_in = shape
    std = jnp.sqrt(2.0 / (fan_in + fan_out))
    return std * jax.random.normal(key, shape, dtype=jnp.float32)


def init_lru_params(key, d_in, d_hidden, d_out, d_in_p, d_hid_p, d_out_p,
                    r_min=0.0, r_max=1.0, max_phase=6.28):
    ks = jax.random.split(key, 7)
    theta_log = jax.random.uniform(ks[0], (d_hidden,), minval=0.0, maxval=max_phase)
    u_rand = jax.random.uniform(ks[1], (d_hidden,), minval=1e-4, maxval=1.0)
    nu_log = jnp.log(-0.5 * jnp.log(u_rand * (r_max ** 2 - r_min ** 2) + r_min ** 2))
    lam_mod = jnp.exp(-jnp.exp(nu_log))
    gamma_log = jnp.log(jnp.sqrt(1.0 - lam_mod ** 2))
    B_re = _xavier_normal(ks[2], (d_hidden, d_in))
    B_im = _xavier_normal(ks[3], (d_hidden, d_in))
    C_re = _xavier_normal(ks[4], (d_out, d_hidden))
    C_im = _xavier_normal(ks[5], (d_out, d_hidden))
    D = _xavier_normal(ks[6], (d_out, d_in))

    lam_re = (lam_mod * jnp.cos(jnp.exp(theta_log))).reshape(1, d_hidden)
    lam_im = (lam_mod * jnp.sin(jnp.exp(theta_log))).reshape(1, d_hidden)
    # NOTE: reference uses diag(gamma_log) (NOT exp(gamma_log)) -- reproduce exactly.
    bn_re = gamma_log[:, None] * B_re
    bn_im = gamma_log[:, None] * B_im

    # Pre-transposed and zero-padded to lane multiples.  Padding is exact:
    # padded hidden channels have lambda=0 and zero B/C rows/cols.
    lam_re = _pad2(lam_re, 1, d_hid_p)
    lam_im = _pad2(lam_im, 1, d_hid_p)
    wbr = _pad2(bn_re.T, d_in_p, d_hid_p)      # (d_in_p, H_p)
    wbi = _pad2(bn_im.T, d_in_p, d_hid_p)
    wcr = _pad2(C_re.T, d_hid_p, d_out_p)      # (H_p, d_out_p)
    wci = _pad2(-C_im.T, d_hid_p, d_out_p)     # minus sign: Re(h @ C^T)
    wd = _pad2(D.T, d_in_p, d_out_p)
    return (lam_re, lam_im, wbr, wbi, wcr, wci, wd)


def init_linear_params(key, d_in, d_out, d_in_p, d_out_p):
    kw, kb = jax.random.split(key)
    bound = 1.0 / jnp.sqrt(d_in)
    w = jax.random.uniform(kw, (d_out, d_in), minval=-bound, maxval=bound)
    b = jax.random.uniform(kb, (d_out,), minval=-bound, maxval=bound)
    w = _pad2(w.T.astype(jnp.float32), d_in_p, d_out_p)        # (d_in_p, d_out_p)
    b = _pad2(b.reshape(1, d_out).astype(jnp.float32), 1, d_out_p)
    return w, b


def init_deep_lru_params(key, d_in, d_hidden, depth, internal_widths, output_widths):
    d_in_p = _pad_lane(d_in)
    d_hid_p = _pad_lane(d_hidden)
    iw = list(internal_widths)
    iw_p = [_pad_lane(w) for w in iw]

    params = {"seq_layers": [], "output_layers": [], "d_in_p": d_in_p}
    d_cur, d_cur_p = d_in, d_in_p
    for _ in range(depth):
        key, klru = jax.random.split(key)
        lru_p = init_lru_params(klru, d_cur, d_hidden, iw[0], d_cur_p, d_hid_p, iw_p[0])
        lins = []
        for i in range(len(iw) - 1):
            key, kl = jax.random.split(key)
            lins.append(init_linear_params(kl, iw[i], iw[i + 1], iw_p[i], iw_p[i + 1]))
        params["seq_layers"].append({"lru": lru_p, "linears": lins})
        d_cur, d_cur_p = iw[-1], iw_p[-1]

    if output_widths is not None:
        if isinstance(output_widths, int):
            output_widths = [output_widths]
        ow = [iw[-1]] + list(output_widths)
        ow_p = [_pad_lane(w) for w in ow]
        for i in range(len(ow) - 1):
            key, kl = jax.random.split(key)
            params["output_layers"].append(
                init_linear_params(kl, ow[i], ow[i + 1], ow_p[i], ow_p[i + 1]))
        params["d_out"] = output_widths[-1]
    else:
        params["d_out"] = iw[-1]
    return params


# --------------------------------------------------------------------------- model forward
def deep_lru_forward(u, params, skip_connection=False, use_bf16=False, t_blk_max=256):
    """u: (B, T, d_in) float32 -> (B, T, d_out) float32."""
    d_in_p = params["d_in_p"]
    if u.shape[-1] != d_in_p:
        u = jnp.pad(u, ((0, 0), (0, 0), (0, d_in_p - u.shape[-1])))
    y = u
    n_layers = len(params["seq_layers"])
    for i, layer_p in enumerate(params["seq_layers"]):
        head = params["output_layers"] if i == n_layers - 1 else ()
        y = sequence_layer_forward(y, layer_p, skip_connection, out_lins=head,
                                   use_bf16=use_bf16, t_blk_max=t_blk_max)
    return y[..., :params["d_out"]]


# --------------------------------------------------------------------------- pure-JAX reference
def _lru_ref(u, lru_p):
    lam_re, lam_im, wbr, wbi, wcr, wci, wd = lru_p
    B = u.shape[0]
    H = lam_re.shape[-1]

    def step(carry, u_t):
        h_re, h_im = carry
        xr = u_t @ wbr
        xi = u_t @ wbi
        nr = h_re * lam_re - h_im * lam_im + xr
        ni = h_re * lam_im + h_im * lam_re + xi
        y = nr @ wcr + ni @ wci + u_t @ wd
        return (nr, ni), y

    h0 = (jnp.zeros((B, H), jnp.float32), jnp.zeros((B, H), jnp.float32))
    _, ys = lax.scan(step, h0, jnp.transpose(u, (1, 0, 2)))
    return jnp.transpose(ys, (1, 0, 2))


def _deep_ref(u, params, skip_connection=False):
    d_in_p = params["d_in_p"]
    if u.shape[-1] != d_in_p:
        u = jnp.pad(u, ((0, 0), (0, 0), (0, d_in_p - u.shape[-1])))
    y = u
    for layer_p in params["seq_layers"]:
        u_in = y
        y = _lru_ref(y, layer_p["lru"])
        lins = layer_p["linears"]
        for (w, b) in lins[:-1]:
            y = jnp.maximum(y @ w + b, 0.0)
        if lins:
            w, b = lins[-1]
            y = y @ w + b
        if skip_connection:
            y = y + u_in
    out_lins = params["output_layers"]
    if out_lins:
        for (w, b) in out_lins[:-1]:
            y = jnp.maximum(y @ w + b, 0.0)
        w, b = out_lins[-1]
        y = y @ w + b
    return y[..., :params["d_out"]]


# --------------------------------------------------------------------------- main
if __name__ == "__main__":
    B, T = 2, 8
    d_in, d_hidden, depth = 4, 8, 2
    internal_widths = [16, 8, 4]
    output_widths = [6, 3]

    key = jax.random.PRNGKey(0)
    kp, kx = jax.random.split(key)
    params = init_deep_lru_params(kp, d_in, d_hidden, depth,
                                  internal_widths, output_widths)
    u = jax.random.normal(kx, (B, T, d_in), dtype=jnp.float32)

    out = jax.block_until_ready(deep_lru_forward(u, params))
    ref = _deep_ref(u, params)
    assert out.shape == (B, T, output_widths[-1]), out.shape
    assert jnp.allclose(out, ref, atol=1e-4, rtol=1e-4), \
        float(jnp.max(jnp.abs(out - ref)))

    # Multi-chunk check: 3 time chunks, exercises the inter-chunk state carry.
    T2 = 192
    u2 = jax.random.normal(jax.random.PRNGKey(1), (B, T2, d_in), dtype=jnp.float32)
    out2 = jax.block_until_ready(deep_lru_forward(u2, params, t_blk_max=64))
    ref2 = _deep_ref(u2, params)
    assert out2.shape == (B, T2, output_widths[-1]), out2.shape
    assert jnp.allclose(out2, ref2, atol=1e-3, rtol=1e-2), \
        float(jnp.max(jnp.abs(out2 - ref2)))

    print("KERNEL_OK")
</pallas_src>

<mosaic_0001>
module attributes {stable_mosaic.version = 11 : i64} {
  func.func @_seq_layer_kernel(%arg0: i32, %arg1: i32, %arg2: memref<1x8x128xf32, #tpu.memory_space<vmem>>, %arg3: memref<1x128xf32, #tpu.memory_space<vmem>>, %arg4: memref<1x128xf32, #tpu.memory_space<vmem>>, %arg5: memref<128x128xf32, #tpu.memory_space<vmem>>, %arg6: memref<128x128xf32, #tpu.memory_space<vmem>>, %arg7: memref<128x128xf32, #tpu.memory_space<vmem>>, %arg8: memref<128x128xf32, #tpu.memory_space<vmem>>, %arg9: memref<128x128xf32, #tpu.memory_space<vmem>>, %arg10: memref<128x128xf32, #tpu.memory_space<vmem>>, %arg11: memref<1x128xf32, #tpu.memory_space<vmem>>, %arg12: memref<128x128xf32, #tpu.memory_space<vmem>>, %arg13: memref<1x128xf32, #tpu.memory_space<vmem>>, %arg14: memref<1x8x128xf32, #tpu.memory_space<vmem>>, %arg15: memref<1x128xf32, #tpu.memory_space<vmem>>, %arg16: memref<1x128xf32, #tpu.memory_space<vmem>>) attributes {dimension_semantics = [#tpu.dimension_semantics<parallel>, #tpu.dimension_semantics<arbitrary>], iteration_bounds = array<i64: 2, 1>, scalar_prefetch = 0 : i64, scratch_operands = 2 : i64, tpu.core_type = #tpu.core_type<tc>, window_params = [{transform_indices = @transform_0, window_bounds = array<i64: 1, 8, 128>}, {pipeline_mode = #tpu.pipeline_mode<synchronous>, transform_indices = @transform_1, window_bounds = array<i64: 1, 128>}, {pipeline_mode = #tpu.pipeline_mode<synchronous>, transform_indices = @transform_2, window_bounds = array<i64: 1, 128>}, {pipeline_mode = #tpu.pipeline_mode<synchronous>, transform_indices = @transform_3, window_bounds = array<i64: 128, 128>}, {pipeline_mode = #tpu.pipeline_mode<synchronous>, transform_indices = @transform_4, window_bounds = array<i64: 128, 128>}, {pipeline_mode = #tpu.pipeline_mode<synchronous>, transform_indices = @transform_5, window_bounds = array<i64: 128, 128>}, {pipeline_mode = #tpu.pipeline_mode<synchronous>, transform_indices = @transform_6, window_bounds = array<i64: 128, 128>}, {pipeline_mode = #tpu.pipeline_mode<synchronous>, transform_indices = @transform_7, window_bounds = array<i64: 128, 128>}, {pipeline_mode = #tpu.pipeline_mode<synchronous>, transform_indices = @transform_8, window_bounds = array<i64: 128, 128>}, {pipeline_mode = #tpu.pipeline_mode<synchronous>, transform_indices = @transform_9, window_bounds = array<i64: 1, 128>}, {pipeline_mode = #tpu.pipeline_mode<synchronous>, transform_indices = @transform_10, window_bounds = array<i64: 128, 128>}, {pipeline_mode = #tpu.pipeline_mode<synchronous>, transform_indices = @transform_11, window_bounds = array<i64: 1, 128>}, {transform_indices = @transform_12, window_bounds = array<i64: 1, 8, 128>}]} {
    %c0_i32 = arith.constant 0 : i32
    %0 = arith.cmpi eq, %arg1, %c0_i32 : i32
    %1 = arith.extui %0 : i1 to i32
    %c0_i32_0 = arith.constant 0 : i32
    %2 = arith.cmpi ne, %1, %c0_i32_0 : i32
    scf.if %2 {
      %cst_49 = arith.constant 0.000000e+00 : f32
      %122 = vector.broadcast %cst_49 : f32 to vector<1x128xf32>
      %c0_50 = arith.constant 0 : index
      %c0_51 = arith.constant 0 : index
      %123 = vector.load %arg15[%c0_50, %c0_51] : memref<1x128xf32, #tpu.memory_space<vmem>>, vector<1x128xf32>
      tpu.vector_store %arg15[%c0_50, %c0_51], %122 {strides = array<i32>} : memref<1x128xf32, #tpu.memory_space<vmem>>, vector<1x128xf32>,
      %cst_52 = arith.constant 0.000000e+00 : f32
      %124 = vector.broadcast %cst_52 : f32 to vector<1x128xf32>
      %c0_53 = arith.constant 0 : index
      %c0_54 = arith.constant 0 : index
      %125 = vector.load %arg16[%c0_53, %c0_54] : memref<1x128xf32, #tpu.memory_space<vmem>>, vector<1x128xf32>
      tpu.vector_store %arg16[%c0_53, %c0_54], %124 {strides = array<i32>} : memref<1x128xf32, #tpu.memory_space<vmem>>, vector<1x128xf32>,
    } else {
    }
    %c0 = arith.constant 0 : index
    %c0_1 = arith.constant 0 : index
    %c0_2 = arith.constant 0 : index
    %3 = vector.load %arg2[%c0, %c0_1, %c0_2] : memref<1x8x128xf32, #tpu.memory_space<vmem>>, vector<1x8x128xf32>
    %4 = vector.shape_cast %3 : vector<1x8x128xf32> to vector<8x128xf32>
    %c0_3 = arith.constant 0 : index
    %c0_4 = arith.constant 0 : index
    %5 = vector.load %arg3[%c0_3, %c0_4] : memref<1x128xf32, #tpu.memory_space<vmem>>, vector<1x128xf32>
    %c0_5 = arith.constant 0 : index
    %c0_6 = arith.constant 0 : index
    %6 = vector.load %arg4[%c0_5, %c0_6] : memref<1x128xf32, #tpu.memory_space<vmem>>, vector<1x128xf32>
    %c0_7 = arith.constant 0 : index
    %c0_8 = arith.constant 0 : index
    %7 = vector.load %arg5[%c0_7, %c0_8] : memref<128x128xf32, #tpu.memory_space<vmem>>, vector<128x128xf32>
    %cst = arith.constant dense<0.000000e+00> : vector<8x128xf32>
    %8 = tpu.matmul %4, %7, %cst {dimension_numbers = #tpu.dot_dimension_numbers<[1], [0], [0], [1], [0, 0, 1, 1], [], []>} : vector<8x128xf32>, vector<128x128xf32>, vector<8x128xf32> -> vector<8x128xf32>
    %c0_9 = arith.constant 0 : index
    %c0_10 = arith.constant 0 : index
    %9 = vector.load %arg6[%c0_9, %c0_10] : memref<128x128xf32, #tpu.memory_space<vmem>>, vector<128x128xf32>
    %cst_11 = arith.constant dense<0.000000e+00> : vector<8x128xf32>
    %10 = tpu.matmul %4, %9, %cst_11 {dimension_numbers = #tpu.dot_dimension_numbers<[1], [0], [0], [1], [0, 0, 1, 1], [], []>} : vector<8x128xf32>, vector<128x128xf32>, vector<8x128xf32> -> vector<8x128xf32>
    %c0_12 = arith.constant 0 : index
    %c0_13 = arith.constant 0 : index
    %11 = vector.load %arg15[%c0_12, %c0_13] : memref<1x128xf32, #tpu.memory_space<vmem>>, vector<1x128xf32>
    %c0_14 = arith.constant 0 : index
    %c0_15 = arith.constant 0 : index
    %12 = vector.load %arg16[%c0_14, %c0_15] : memref<1x128xf32, #tpu.memory_space<vmem>>, vector<1x128xf32>
    %13 = arith.mulf %5, %11 : vector<1x128xf32>
    %14 = arith.mulf %6, %12 : vector<1x128xf32>
    %15 = arith.subf %13, %14 : vector<1x128xf32>
    %16 = arith.mulf %5, %12 : vector<1x128xf32>
    %17 = arith.mulf %6, %11 : vector<1x128xf32>
    %18 = arith.addf %16, %17 : vector<1x128xf32>
    %19 = tpu.iota {dimensions = array<i32: 0>} : vector<8x1xi32>
    %c0_i32_16 = arith.constant 0 : i32
    %20 = vector.broadcast %c0_i32_16 : i32 to vector<8x1xi32>
    %21 = arith.cmpi eq, %19, %20 : vector<8x1xi32>
    %22 = vector.broadcast %15 : vector<1x128xf32> to vector<8x128xf32>
    %23 = arith.addf %8, %22 : vector<8x128xf32>
    %24 = vector.shape_cast %21 : vector<8x1xi1> to vector<8x1xi1>
    %25 = vector.broadcast %24 : vector<8x1xi1> to vector<8x128xi1>
    %26 = arith.select %25, %23, %8 : vector<8x128xi1>, vector<8x128xf32>
    %27 = vector.broadcast %18 : vector<1x128xf32> to vector<8x128xf32>
    %28 = arith.addf %10, %27 : vector<8x128xf32>
    %29 = vector.shape_cast %21 : vector<8x1xi1> to vector<8x1xi1>
    %30 = vector.broadcast %29 : vector<8x1xi1> to vector<8x128xi1>
    %31 = arith.select %30, %28, %10 : vector<8x128xi1>, vector<8x128xf32>
    %cst_17 = arith.constant 0.000000e+00 : f32
    %32 = vector.broadcast %cst_17 : f32 to vector<1x128xf32>
    %33 = vector.extract_strided_slice %26 {offsets = [0, 0], sizes = [7, 128], strides = [1, 1]} : vector<8x128xf32> to vector<7x128xf32>
    %34 = tpu.concatenate %32, %33 in 0 : vector<1x128xf32>, vector<7x128xf32> -> vector<8x128xf32>
    %35 = vector.extract_strided_slice %31 {offsets = [0, 0], sizes = [7, 128], strides = [1, 1]} : vector<8x128xf32> to vector<7x128xf32>
    %36 = tpu.concatenate %32, %35 in 0 : vector<1x128xf32>, vector<7x128xf32> -> vector<8x128xf32>
    %37 = vector.broadcast %5 : vector<1x128xf32> to vector<8x128xf32>
    %38 = arith.mulf %37, %34 : vector<8x128xf32>
    %39 = vector.broadcast %6 : vector<1x128xf32> to vector<8x128xf32>
    %40 = arith.mulf %39, %36 : vector<8x128xf32>
    %41 = arith.subf %38, %40 : vector<8x128xf32>
    %42 = arith.addf %26, %41 : vector<8x128xf32>
    %43 = vector.broadcast %5 : vector<1x128xf32> to vector<8x128xf32>
    %44 = arith.mulf %43, %36 : vector<8x128xf32>
    %45 = vector.broadcast %6 : vector<1x128xf32> to vector<8x128xf32>
    %46 = arith.mulf %45, %34 : vector<8x128xf32>
    %47 = arith.addf %44, %46 : vector<8x128xf32>
    %48 = arith.addf %31, %47 : vector<8x128xf32>
    %49 = arith.mulf %5, %5 : vector<1x128xf32>
    %50 = arith.mulf %6, %6 : vector<1x128xf32>
    %51 = arith.subf %49, %50 : vector<1x128xf32>
    %cst_18 = arith.constant 2.000000e+00 : f32
    %52 = vector.broadcast %cst_18 : f32 to vector<1x128xf32>
    %53 = arith.mulf %52, %5 : vector<1x128xf32>
    %54 = arith.mulf %53, %6 : vector<1x128xf32>
    %cst_19 = arith.constant 0.000000e+00 : f32
    %55 = vector.broadcast %cst_19 : f32 to vector<2x128xf32>
    %56 = vector.extract_strided_slice %42 {offsets = [0, 0], sizes = [6, 128], strides = [1, 1]} : vector<8x128xf32> to vector<6x128xf32>
    %57 = tpu.concatenate %55, %56 in 0 : vector<2x128xf32>, vector<6x128xf32> -> vector<8x128xf32>
    %58 = vector.extract_strided_slice %48 {offsets = [0, 0], sizes = [6, 128], strides = [1, 1]} : vector<8x128xf32> to vector<6x128xf32>
    %59 = tpu.concatenate %55, %58 in 0 : vector<2x128xf32>, vector<6x128xf32> -> vector<8x128xf32>
    %60 = vector.broadcast %51 : vector<1x128xf32> to vector<8x128xf32>
    %61 = arith.mulf %60, %57 : vector<8x128xf32>
    %62 = vector.broadcast %54 : vector<1x128xf32> to vector<8x128xf32>
    %63 = arith.mulf %62, %59 : vector<8x128xf32>
    %64 = arith.subf %61, %63 : vector<8x128xf32>
    %65 = arith.addf %42, %64 : vector<8x128xf32>
    %66 = vector.broadcast %51 : vector<1x128xf32> to vector<8x128xf32>
    %67 = arith.mulf %66, %59 : vector<8x128xf32>
    %68 = vector.broadcast %54 : vector<1x128xf32> to vector<8x128xf32>
    %69 = arith.mulf %68, %57 : vector<8x128xf32>
    %70 = arith.addf %67, %69 : vector<8x128xf32>
    %71 = arith.addf %48, %70 : vector<8x128xf32>
    %72 = arith.mulf %51, %51 : vector<1x128xf32>
    %73 = arith.mulf %54, %54 : vector<1x128xf32>
    %74 = arith.subf %72, %73 : vector<1x128xf32>
    %cst_20 = arith.constant 2.000000e+00 : f32
    %75 = vector.broadcast %cst_20 : f32 to vector<1x128xf32>
    %76 = arith.mulf %75, %51 : vector<1x128xf32>
    %77 = arith.mulf %76, %54 : vector<1x128xf32>
    %cst_21 = arith.constant 0.000000e+00 : f32
    %78 = vector.broadcast %cst_21 : f32 to vector<4x128xf32>
    %79 = vector.extract_strided_slice %65 {offsets = [0, 0], sizes = [4, 128], strides = [1, 1]} : vector<8x128xf32> to vector<4x128xf32>
    %80 = tpu.concatenate %78, %79 in 0 : vector<4x128xf32>, vector<4x128xf32> -> vector<8x128xf32>
    %81 = vector.extract_strided_slice %71 {offsets = [0, 0], sizes = [4, 128], strides = [1, 1]} : vector<8x128xf32> to vector<4x128xf32>
    %82 = tpu.concatenate %78, %81 in 0 : vector<4x128xf32>, vector<4x128xf32> -> vector<8x128xf32>
    %83 = vector.broadcast %74 : vector<1x128xf32> to vector<8x128xf32>
    %84 = arith.mulf %83, %80 : vector<8x128xf32>
    %85 = vector.broadcast %77 : vector<1x128xf32> to vector<8x128xf32>
    %86 = arith.mulf %85, %82 : vector<8x128xf32>
    %87 = arith.subf %84, %86 : vector<8x128xf32>
    %88 = arith.addf %65, %87 : vector<8x128xf32>
    %89 = vector.broadcast %74 : vector<1x128xf32> to vector<8x128xf32>
    %90 = arith.mulf %89, %82 : vector<8x128xf32>
    %91 = vector.broadcast %77 : vector<1x128xf32> to vector<8x128xf32>
    %92 = arith.mulf %91, %80 : vector<8x128xf32>
    %93 = arith.addf %90, %92 : vector<8x128xf32>
    %94 = arith.addf %71, %93 : vector<8x128xf32>
    %95 = vector.extract_strided_slice %88 {offsets = [7, 0], sizes = [1, 128], strides = [1, 1]} : vector<8x128xf32> to vector<1x128xf32>
    %c0_22 = arith.constant 0 : index
    %c0_23 = arith.constant 0 : index
    %96 = vector.load %arg15[%c0_22, %c0_23] : memref<1x128xf32, #tpu.memory_space<vmem>>, vector<1x128xf32>
    tpu.vector_store %arg15[%c0_22, %c0_23], %95 {strides = array<i32>} : memref<1x128xf32, #tpu.memory_space<vmem>>, vector<1x128xf32>,
    %97 = vector.extract_strided_slice %94 {offsets = [7, 0], sizes = [1, 128], strides = [1, 1]} : vector<8x128xf32> to vector<1x128xf32>
    %c0_24 = arith.constant 0 : index
    %c0_25 = arith.constant 0 : index
    %98 = vector.load %arg16[%c0_24, %c0_25] : memref<1x128xf32, #tpu.memory_space<vmem>>, vector<1x128xf32>
    tpu.vector_store %arg16[%c0_24, %c0_25], %97 {strides = array<i32>} : memref<1x128xf32, #tpu.memory_space<vmem>>, vector<1x128xf32>,
    %c0_26 = arith.constant 0 : index
    %c0_27 = arith.constant 0 : index
    %99 = vector.load %arg7[%c0_26, %c0_27] : memref<128x128xf32, #tpu.memory_space<vmem>>, vector<128x128xf32>
    %cst_28 = arith.constant dense<0.000000e+00> : vector<8x128xf32>
    %100 = tpu.matmul %88, %99, %cst_28 {dimension_numbers = #tpu.dot_dimension_numbers<[1], [0], [0], [1], [0, 0, 1, 1], [], []>} : vector<8x128xf32>, vector<128x128xf32>, vector<8x128xf32> -> vector<8x128xf32>
    %c0_29 = arith.constant 0 : index
    %c0_30 = arith.constant 0 : index
    %101 = vector.load %arg8[%c0_29, %c0_30] : memref<128x128xf32, #tpu.memory_space<vmem>>, vector<128x128xf32>
    %cst_31 = arith.constant dense<0.000000e+00> : vector<8x128xf32>
    %102 = tpu.matmul %94, %101, %cst_31 {dimension_numbers = #tpu.dot_dimension_numbers<[1], [0], [0], [1], [0, 0, 1, 1], [], []>} : vector<8x128xf32>, vector<128x128xf32>, vector<8x128xf32> -> vector<8x128xf32>
    %103 = arith.addf %100, %102 : vector<8x128xf32>
    %c0_32 = arith.constant 0 : index
    %c0_33 = arith.constant 0 : index
    %104 = vector.load %arg9[%c0_32, %c0_33] : memref<128x128xf32, #tpu.memory_space<vmem>>, vector<128x128xf32>
    %cst_34 = arith.constant dense<0.000000e+00> : vector<8x128xf32>
    %105 = tpu.matmul %4, %104, %cst_34 {dimension_numbers = #tpu.dot_dimension_numbers<[1], [0], [0], [1], [0, 0, 1, 1], [], []>} : vector<8x128xf32>, vector<128x128xf32>, vector<8x128xf32> -> vector<8x128xf32>
    %106 = arith.addf %103, %105 : vector<8x128xf32>
    %c0_35 = arith.constant 0 : index
    %c0_36 = arith.constant 0 : index
    %107 = vector.load %arg10[%c0_35, %c0_36] : memref<128x128xf32, #tpu.memory_space<vmem>>, vector<128x128xf32>
    %c0_37 = arith.constant 0 : index
    %c0_38 = arith.constant 0 : index
    %108 = vector.load %arg11[%c0_37, %c0_38] : memref<1x128xf32, #tpu.memory_space<vmem>>, vector<1x128xf32>
    %cst_39 = arith.constant dense<0.000000e+00> : vector<8x128xf32>
    %109 = tpu.matmul %106, %107, %cst_39 {dimension_numbers = #tpu.dot_dimension_numbers<[1], [0], [0], [1], [0, 0, 1, 1], [], []>} : vector<8x128xf32>, vector<128x128xf32>, vector<8x128xf32> -> vector<8x128xf32>
    %110 = vector.broadcast %108 : vector<1x128xf32> to vector<8x128xf32>
    %111 = arith.addf %109, %110 : vector<8x128xf32>
    %cst_40 = arith.constant 0.000000e+00 : f32
    %112 = vector.broadcast %cst_40 : f32 to vector<8x128xf32>
    %113 = arith.maximumf %111, %112 : vector<8x128xf32>
    %c0_41 = arith.constant 0 : index
    %c0_42 = arith.constant 0 : index
    %114 = vector.load %arg12[%c0_41, %c0_42] : memref<128x128xf32, #tpu.memory_space<vmem>>, vector<128x128xf32>
    %c0_43 = arith.constant 0 : index
    %c0_44 = arith.constant 0 : index
    %115 = vector.load %arg13[%c0_43, %c0_44] : memref<1x128xf32, #tpu.memory_space<vmem>>, vector<1x128xf32>
    %cst_45 = arith.constant dense<0.000000e+00> : vector<8x128xf32>
    %116 = tpu.matmul %113, %114, %cst_45 {dimension_numbers = #tpu.dot_dimension_numbers<[1], [0], [0], [1], [0, 0, 1, 1], [], []>} : vector<8x128xf32>, vector<128x128xf32>, vector<8x128xf32> -> vector<8x128xf32>
    %117 = vector.broadcast %115 : vector<1x128xf32> to vector<8x128xf32>
    %118 = arith.addf %116, %117 : vector<8x128xf32>
    %c0_46 = arith.constant 0 : index
    %c0_47 = arith.constant 0 : index
    %c0_48 = arith.constant 0 : index
    %119 = vector.load %arg14[%c0_46, %c0_47, %c0_48] : memref<1x8x128xf32, #tpu.memory_space<vmem>>, vector<1x8x128xf32>
    %120 = vector.shape_cast %119 : vector<1x8x128xf32> to vector<8x128xf32>
    %121 = vector.shape_cast %118 : vector<8x128xf32> to vector<1x8x128xf32>
    tpu.vector_store %arg14[%c0_46, %c0_47, %c0_48], %121 {strides = array<i32>} : memref<1x8x128xf32, #tpu.memory_space<vmem>>, vector<1x8x128xf32>,
    return
  }
  func.func @transform_0(%arg0: i32, %arg1: i32) -> (i32, i32, i32) {
    %c0_i32 = arith.constant 0 : i32
    %c0_i32_0 = arith.constant 0 : i32
    return %arg0, %arg1, %c0_i32 : i32, i32, i32
  }
  func.func @transform_1(%arg0: i32, %arg1: i32) -> (i32, i32) {
    %c0_i32 = arith.constant 0 : i32
    %c0_i32_0 = arith.constant 0 : i32
    %c0_i32_1 = arith.constant 0 : i32
    return %c0_i32, %c0_i32_0 : i32, i32
  }
  func.func @transform_2(%arg0: i32, %arg1: i32) -> (i32, i32) {
    %c0_i32 = arith.constant 0 : i32
    %c0_i32_0 = arith.constant 0 : i32
    %c0_i32_1 = arith.constant 0 : i32
    return %c0_i32, %c0_i32_0 : i32, i32
  }
  func.func @transform_3(%arg0: i32, %arg1: i32) -> (i32, i32) {
    %c0_i32 = arith.constant 0 : i32
    %c0_i32_0 = arith.constant 0 : i32
    %c0_i32_1 = arith.constant 0 : i32
    return %c0_i32, %c0_i32_0 : i32, i32
  }
  func.func @transform_4(%arg0: i32, %arg1: i32) -> (i32, i32) {
    %c0_i32 = arith.constant 0 : i32
    %c0_i32_0 = arith.constant 0 : i32
    %c0_i32_1 = arith.constant 0 : i32
    return %c0_i32, %c0_i32_0 : i32, i32
  }
  func.func @transform_5(%arg0: i32, %arg1: i32) -> (i32, i32) {
    %c0_i32 = arith.constant 0 : i32
    %c0_i32_0 = arith.constant 0 : i32
    %c0_i32_1 = arith.constant 0 : i32
    return %c0_i32, %c0_i32_0 : i32, i32
  }
  func.func @transform_6(%arg0: i32, %arg1: i32) -> (i32, i32) {
    %c0_i32 = arith.constant 0 : i32
    %c0_i32_0 = arith.constant 0 : i32
    %c0_i32_1 = arith.constant 0 : i32
    return %c0_i32, %c0_i32_0 : i32, i32
  }
  func.func @transform_7(%arg0: i32, %arg1: i32) -> (i32, i32) {
    %c0_i32 = arith.constant 0 : i32
    %c0_i32_0 = arith.constant 0 : i32
    %c0_i32_1 = arith.constant 0 : i32
    return %c0_i32, %c0_i32_0 : i32, i32
  }
  func.func @transform_8(%arg0: i32, %arg1: i32) -> (i32, i32) {
    %c0_i32 = arith.constant 0 : i32
    %c0_i32_0 = arith.constant 0 : i32
    %c0_i32_1 = arith.constant 0 : i32
    return %c0_i32, %c0_i32_0 : i32, i32
  }
  func.func @transform_9(%arg0: i32, %arg1: i32) -> (i32, i32) {
    %c0_i32 = arith.constant 0 : i32
    %c0_i32_0 = arith.constant 0 : i32
    %c0_i32_1 = arith.constant 0 : i32
    return %c0_i32, %c0_i32_0 : i32, i32
  }
  func.func @transform_10(%arg0: i32, %arg1: i32) -> (i32, i32) {
    %c0_i32 = arith.constant 0 : i32
    %c0_i32_0 = arith.constant 0 : i32
    %c0_i32_1 = arith.constant 0 : i32
    return %c0_i32, %c0_i32_0 : i32, i32
  }
  func.func @transform_11(%arg0: i32, %arg1: i32) -> (i32, i32) {
    %c0_i32 = arith.constant 0 : i32
    %c0_i32_0 = arith.constant 0 : i32
    %c0_i32_1 = arith.constant 0 : i32
    return %c0_i32, %c0_i32_0 : i32, i32
  }
  func.func @transform_12(%arg0: i32, %arg1: i32) -> (i32, i32, i32) {
    %c0_i32 = arith.constant 0 : i32
    %c0_i32_0 = arith.constant 0 : i32
    return %arg0, %arg1, %c0_i32 : i32, i32, i32
  }
}

</mosaic_0001>

<llo_original>
// kernel: tpu_custom_call.1
$region0: #{tpu_custom_call.1}
  #allocation0 [shape = 'u32[]', space=smem, size = 0x4, offset = 0x4, fixed_abs, tag = 'smem constant byte address 0x4 - core index']
  #allocation1 [shape = 'u32[144,128]{1,0:T(1,128)}', space=vmem, size = 0x12000, scoped, tag = 'internal scratch']
  #allocation2 [shape = 'f32[1,128]{1,0:T(1,128)}', space=vmem, size = 0x200, scoped, tag = 'scratch operand']
  #allocation3 [shape = 'f32[1,128]{1,0:T(1,128)}', space=vmem, size = 0x200, scoped, tag = 'scratch operand']
  %s0 = inlined_call_operand.hbm [shape: f32[2,8,128], index: 0, kind: input, shape index: {}]
  %s1 = inlined_call_operand.vmem [shape: f32[1,128], index: 1, kind: input, shape index: {}]
  %s2 = inlined_call_operand.vmem [shape: f32[1,128], index: 2, kind: input, shape index: {}]
  %s3 = inlined_call_operand.hbm [shape: f32[128,128], index: 3, kind: input, shape index: {}]
  %s4 = inlined_call_operand.hbm [shape: f32[128,128], index: 4, kind: input, shape index: {}]
  %s5 = inlined_call_operand.hbm [shape: f32[128,128], index: 5, kind: input, shape index: {}]
  %s6 = inlined_call_operand.hbm [shape: f32[128,128], index: 6, kind: input, shape index: {}]
  %s7 = inlined_call_operand.hbm [shape: f32[128,128], index: 7, kind: input, shape index: {}]
  %s8 = inlined_call_operand.hbm [shape: f32[128,128], index: 8, kind: input, shape index: {}]
  %s9 = inlined_call_operand.vmem [shape: f32[1,128], index: 9, kind: input, shape index: {}]
  %s10 = inlined_call_operand.hbm [shape: f32[128,128], index: 10, kind: input, shape index: {}]
  %s11 = inlined_call_operand.vmem [shape: f32[1,128], index: 11, kind: input, shape index: {}]
  %s12 = inlined_call_operand.hbm [shape: f32[2,8,128], index: 12, kind: output, shape index: {}]
  %s13 = sld [smem:[#allocation0]]
  $region117: #{tpu_custom_call.1} parent=0
    _
  %s15 = ssub.s32 1, %s13
  %s16 = scalar_select 0, %s15, %s13
  $region1: #{tpu_custom_call.1} parent=0
    #allocation4 [shape = 'u8[8192]{0}', space=vmem, size = 0x2000, scoped, tag = 'input window, operand 0']
    #allocation5 [shape = 's32[2]{0}', space=sflag, size = 0x8, scoped, tag = 'scoped memory for tpu_custom_call.1']
    #allocation6 [shape = 's32[2]{0}', space=sflag, size = 0x8, scoped, tag = 'scoped memory for tpu_custom_call.1']
    #allocation7 [shape = 'u8[65536]{0}', space=vmem, size = 0x10000, scoped, tag = 'input window, operand 3, single buffered']
    #allocation8 [shape = 's32[1]{0}', space=sflag, size = 0x4, scoped, tag = 'scoped memory for tpu_custom_call.1']
    #allocation9 [shape = 'u8[65536]{0}', space=vmem, size = 0x10000, scoped, tag = 'input window, operand 4, single buffered']
    #allocation10 [shape = 'u8[65536]{0}', space=vmem, size = 0x10000, scoped, tag = 'input window, operand 5, single buffered']
    #allocation11 [shape = 's32[1]{0}', space=sflag, size = 0x4, scoped, tag = 'scoped memory for tpu_custom_call.1']
    #allocation12 [shape = 'u8[65536]{0}', space=vmem, size = 0x10000, scoped, tag = 'input window, operand 6, single buffered']
    #allocation13 [shape = 'u8[65536]{0}', space=vmem, size = 0x10000, scoped, tag = 'input window, operand 7, single buffered']
    #allocation14 [shape = 's32[1]{0}', space=sflag, size = 0x4, scoped, tag = 'scoped memory for tpu_custom_call.1']
    #allocation15 [shape = 'u8[65536]{0}', space=vmem, size = 0x10000, scoped, tag = 'input window, operand 8, single buffered']
    #allocation16 [shape = 'u8[65536]{0}', space=vmem, size = 0x10000, scoped, tag = 'input window, operand 10, single buffered']
    #allocation17 [shape = 's32[1]{0}', space=sflag, size = 0x4, scoped, tag = 'scoped memory for tpu_custom_call.1']
    #allocation18 [shape = 'u8[8192]{0}', space=vmem, size = 0x2000, scoped, tag = 'output window, operand 0']
    %17 = vsyncpa [#allocation5], 0
    %s18 = scalar_lea.sflag [#allocation5], 1
    %19 = vsyncpa %s18, 0
    %20 = vsyncpa [#allocation8], 0
    %21 = vsyncpa [#allocation11], 0
    %22 = vsyncpa [#allocation14], 0
    %23 = vsyncpa [#allocation17], 0
    %24 = vsyncpa [#allocation6], 0
    %s25 = scalar_lea.sflag [#allocation6], 1
    %26 = vsyncpa %s25, 0
    loop: start=0, step=1, limit=4
    $region2: #{tpu_custom_call.1} parent=1 // loop_pre_header
      _
    $region3: #{tpu_custom_call.1} parent=1 // loop_header
      %s28 = sphi 0, %s32
      %p29 = scmp.ge.s32.totalorder %s28, 4
      %s35 = sphi 0, %s47
      %s36 = sphi 0, %s43
      %s37 = sphi 0, %s35
      %s38 = sphi 0, %s36
      %s39 = sphi 0, %s37
      %s40 = sphi 0, %s38
      %s52 = sphi 0, %s54
      %s55 = sphi 0, %s52
      %s56 = sphi 0, %s55
      %s72 = sphi 0, %s56
      %s76 = sphi 0, %s76
      %s78 = sphi 0, %s76
      %s79 = sphi 0, %s78
      %s93 = sphi 0, %s79
      %s97 = sphi 0, %s97
      %s99 = sphi 0, %s97
      %s100 = sphi 0, %s99
      %s114 = sphi 0, %s100
      %s118 = sphi 0, %s118
      %s120 = sphi 0, %s118
      %s121 = sphi 0, %s120
      %s135 = sphi 0, %s121
      %s139 = sphi 0, %s139
      %s141 = sphi 0, %s139
      %s142 = sphi 0, %s141
      %s156 = sphi 0, %s142
      %s160 = sphi 0, %s160
      %s162 = sphi 0, %s160
      %s163 = sphi 0, %s162
      %s177 = sphi 0, %s163
      %s181 = sphi 0, %s181
      %s183 = sphi 0, %s181
      %s184 = sphi 0, %s183
      %s198 = sphi 0, %s184
      %s202 = sphi 0, %s202
      %s204 = sphi 0, %s202
      %s205 = sphi 0, %s204
      %s219 = sphi 0, %s205
      %s223 = sphi 0, %s223
      %s225 = sphi 0, %s223
      %s226 = sphi 0, %s225
      %s240 = sphi 0, %s226
      %s244 = sphi 0, %s244
      %s246 = sphi 0, %s244
      %s247 = sphi 0, %s246
      %s261 = sphi 0, %s247
      %s265 = sphi 0, %s265
      %s267 = sphi 0, %s265
      %s268 = sphi 0, %s267
      %s282 = sphi 0, %s268
      %s286 = sphi 0, %s286
      %s288 = sphi 0, %s286
      %s289 = sphi 0, %s288
      %s303 = sphi 0, %s289
      %s311 = sphi 0, %s313
      %s314 = sphi 0, %s311
      %s315 = sphi 0, %s314
      %s331 = sphi 0, %s315
    $region4: #{tpu_custom_call.1} parent=1 // loop_header_branch
      %31 = sbr.rel (%p29) target = $region8
    $region5: #{tpu_custom_call.1} parent=1 // loop_body
      %s33 = ssub.s32 %s28, 1
      %s34 = ssub.s32 %s28, 2
      %s41 = sadd.s32 1, %s36
      %p42 = scmp.ge.s32.totalorder %s41, 1
      %s43 = scalar_select %p42, 0, %s41
      %s44 = sadd.s32 1, %s35
      %s45 = scalar_select %p42, %s44, %s35
      %p46 = scmp.ge.s32.totalorder %s45, 2
      %s47 = scalar_select %p46, 0, %s45
      %s48 = ssub.s32 %s35, %s47
      %s49 = ssub.s32 %s36, %s43
      %s50 = sor.u32 %s48, %s49
      %p51 = scmp.eq.s32.totalorder %s50, 0
      %s53 = sadd.s32 %s52, 1
      %s54 = scalar_select %p51, %s52, %s53
      %p57 = pneg %p51
      %p58 = scmp.eq.s32.totalorder %s28, 1
      %p59 = por %p57, %p58
      %p60 = scmp.ne.s32.totalorder %s52, %s55
      %p61 = scmp.eq.s32.totalorder %s28, 0
      %p62 = por %p60, %p61
      %p63 = scmp.ne.s32.totalorder %s52, %s55
      %p64 = scmp.eq.s32.totalorder %s33, 1
      %p65 = por %p63, %p64
      %p66 = scmp.ne.s32.totalorder %s55, %s56
      %p67 = scmp.eq.s32.totalorder %s33, 0
      %p68 = por %p66, %p67
      %p69 = scmp.ne.s32.totalorder %s55, %s56
      %p70 = scmp.eq.s32.totalorder %s34, 1
      %p71 = por %p69, %p70
      %p73 = scmp.ne.s32.totalorder %s56, %s72
      %p74 = scmp.eq.s32.totalorder %s34, 0
      %p75 = por %p73, %p74
      %s77 = sadd.s32 %s76, 1
      %p80 = scmp.eq.s32.totalorder %s28, 1
      %p81 = scmp.ne.s32.totalorder %s76, %s78
      %p82 = scmp.eq.s32.totalorder %s28, 0
      %p83 = por %p81, %p82
      %p84 = scmp.ne.s32.totalorder %s76, %s78
      %p85 = scmp.eq.s32.totalorder %s33, 1
      %p86 = por %p84, %p85
      %p87 = scmp.ne.s32.totalorder %s78, %s79
      %p88 = scmp.eq.s32.totalorder %s33, 0
      %p89 = por %p87, %p88
      %p90 = scmp.ne.s32.totalorder %s78, %s79
      %p91 = scmp.eq.s32.totalorder %s34, 1
      %p92 = por %p90, %p91
      %p94 = scmp.ne.s32.totalorder %s79, %s93
      %p95 = scmp.eq.s32.totalorder %s34, 0
      %p96 = por %p94, %p95
      %s98 = sadd.s32 %s97, 1
      %p101 = scmp.eq.s32.totalorder %s28, 1
      %p102 = scmp.ne.s32.totalorder %s97, %s99
      %p103 = scmp.eq.s32.totalorder %s28, 0
      %p104 = por %p102, %p103
      %p105 = scmp.ne.s32.totalorder %s97, %s99
      %p106 = scmp.eq.s32.totalorder %s33, 1
      %p107 = por %p105, %p106
      %p108 = scmp.ne.s32.totalorder %s99, %s100
      %p109 = scmp.eq.s32.totalorder %s33, 0
      %p110 = por %p108, %p109
      %p111 = scmp.ne.s32.totalorder %s99, %s100
      %p112 = scmp.eq.s32.totalorder %s34, 1
      %p113 = por %p111, %p112
      %p115 = scmp.ne.s32.totalorder %s100, %s114
      %p116 = scmp.eq.s32.totalorder %s34, 0
      %p117 = por %p115, %p116
      %s119 = sadd.s32 %s118, 1
      %p122 = scmp.eq.s32.totalorder %s28, 1
      %p123 = scmp.ne.s32.totalorder %s118, %s120
      %p124 = scmp.eq.s32.totalorder %s28, 0
      %p125 = por %p123, %p124
      %p126 = scmp.ne.s32.totalorder %s118, %s120
      %p127 = scmp.eq.s32.totalorder %s33, 1
      %p128 = por %p126, %p127
      %p129 = scmp.ne.s32.totalorder %s120, %s121
      %p130 = scmp.eq.s32.totalorder %s33, 0
      %p131 = por %p129, %p130
      %p132 = scmp.ne.s32.totalorder %s120, %s121
      %p133 = scmp.eq.s32.totalorder %s34, 1
      %p134 = por %p132, %p133
      %p136 = scmp.ne.s32.totalorder %s121, %s135
      %p137 = scmp.eq.s32.totalorder %s34, 0
      %p138 = por %p136, %p137
      %s140 = sadd.s32 %s139, 1
      %p143 = scmp.eq.s32.totalorder %s28, 1
      %p144 = scmp.ne.s32.totalorder %s139, %s141
      %p145 = scmp.eq.s32.totalorder %s28, 0
      %p146 = por %p144, %p145
      %p147 = scmp.ne.s32.totalorder %s139, %s141
      %p148 = scmp.eq.s32.totalorder %s33, 1
      %p149 = por %p147, %p148
      %p150 = scmp.ne.s32.totalorder %s141, %s142
      %p151 = scmp.eq.s32.totalorder %s33, 0
      %p152 = por %p150, %p151
      %p153 = scmp.ne.s32.totalorder %s141, %s142
      %p154 = scmp.eq.s32.totalorder %s34, 1
      %p155 = por %p153, %p154
      %p157 = scmp.ne.s32.totalorder %s142, %s156
      %p158 = scmp.eq.s32.totalorder %s34, 0
      %p159 = por %p157, %p158
      %s161 = sadd.s32 %s160, 1
      %p164 = scmp.eq.s32.totalorder %s28, 1
      %p165 = scmp.ne.s32.totalorder %s160, %s162
      %p166 = scmp.eq.s32.totalorder %s28, 0
      %p167 = por %p165, %p166
      %p168 = scmp.ne.s32.totalorder %s160, %s162
      %p169 = scmp.eq.s32.totalorder %s33, 1
      %p170 = por %p168, %p169
      %p171 = scmp.ne.s32.totalorder %s162, %s163
      %p172 = scmp.eq.s32.totalorder %s33, 0
      %p173 = por %p171, %p172
      %p174 = scmp.ne.s32.totalorder %s162, %s163
      %p175 = scmp.eq.s32.totalorder %s34, 1
      %p176 = por %p174, %p175
      %p178 = scmp.ne.s32.totalorder %s163, %s177
      %p179 = scmp.eq.s32.totalorder %s34, 0
      %p180 = por %p178, %p179
      %s182 = sadd.s32 %s181, 1
      %p185 = scmp.eq.s32.totalorder %s28, 1
      %p186 = scmp.ne.s32.totalorder %s181, %s183
      %p187 = scmp.eq.s32.totalorder %s28, 0
      %p188 = por %p186, %p187
      %p189 = scmp.ne.s32.totalorder %s181, %s183
      %p190 = scmp.eq.s32.totalorder %s33, 1
      %p191 = por %p189, %p190
      %p192 = scmp.ne.s32.totalorder %s183, %s184
      %p193 = scmp.eq.s32.totalorder %s33, 0
      %p194 = por %p192, %p193
      %p195 = scmp.ne.s32.totalorder %s183, %s184
      %p196 = scmp.eq.s32.totalorder %s34, 1
      %p197 = por %p195, %p196
      %p199 = scmp.ne.s32.totalorder %s184, %s198
      %p200 = scmp.eq.s32.totalorder %s34, 0
      %p201 = por %p199, %p200
      %s203 = sadd.s32 %s202, 1
      %p206 = scmp.eq.s32.totalorder %s28, 1
      %p207 = scmp.ne.s32.totalorder %s202, %s204
      %p208 = scmp.eq.s32.totalorder %s28, 0
      %p209 = por %p207, %p208
      %p210 = scmp.ne.s32.totalorder %s202, %s204
      %p211 = scmp.eq.s32.totalorder %s33, 1
      %p212 = por %p210, %p211
      %p213 = scmp.ne.s32.totalorder %s204, %s205
      %p214 = scmp.eq.s32.totalorder %s33, 0
      %p215 = por %p213, %p214
      %p216 = scmp.ne.s32.totalorder %s204, %s205
      %p217 = scmp.eq.s32.totalorder %s34, 1
      %p218 = por %p216, %p217
      %p220 = scmp.ne.s32.totalorder %s205, %s219
      %p221 = scmp.eq.s32.totalorder %s34, 0
      %p222 = por %p220, %p221
      %s224 = sadd.s32 %s223, 1
      %p227 = scmp.eq.s32.totalorder %s28, 1
      %p228 = scmp.ne.s32.totalorder %s223, %s225
      %p229 = scmp.eq.s32.totalorder %s28, 0
      %p230 = por %p228, %p229
      %p231 = scmp.ne.s32.totalorder %s223, %s225
      %p232 = scmp.eq.s32.totalorder %s33, 1
      %p233 = por %p231, %p232
      %p234 = scmp.ne.s32.totalorder %s225, %s226
      %p235 = scmp.eq.s32.totalorder %s33, 0
      %p236 = por %p234, %p235
      %p237 = scmp.ne.s32.totalorder %s225, %s226
      %p238 = scmp.eq.s32.totalorder %s34, 1
      %p239 = por %p237, %p238
      %p241 = scmp.ne.s32.totalorder %s226, %s240
      %p242 = scmp.eq.s32.totalorder %s34, 0
      %p243 = por %p241, %p242
      %s245 = sadd.s32 %s244, 1
      %p248 = scmp.eq.s32.totalorder %s28, 1
      %p249 = scmp.ne.s32.totalorder %s244, %s246
      %p250 = scmp.eq.s32.totalorder %s28, 0
      %p251 = por %p249, %p250
      %p252 = scmp.ne.s32.totalorder %s244, %s246
      %p253 = scmp.eq.s32.totalorder %s33, 1
      %p254 = por %p252, %p253
      %p255 = scmp.ne.s32.totalorder %s246, %s247
      %p256 = scmp.eq.s32.totalorder %s33, 0
      %p257 = por %p255, %p256
      %p258 = scmp.ne.s32.totalorder %s246, %s247
      %p259 = scmp.eq.s32.totalorder %s34, 1
      %p260 = por %p258, %p259
      %p262 = scmp.ne.s32.totalorder %s247, %s261
      %p263 = scmp.eq.s32.totalorder %s34, 0
      %p264 = por %p262, %p263
      %s266 = sadd.s32 %s265, 1
      %p269 = scmp.eq.s32.totalorder %s28, 1
      %p270 = scmp.ne.s32.totalorder %s265, %s267
      %p271 = scmp.eq.s32.totalorder %s28, 0
      %p272 = por %p270, %p271
      %p273 = scmp.ne.s32.totalorder %s265, %s267
      %p274 = scmp.eq.s32.totalorder %s33, 1
      %p275 = por %p273, %p274
      %p276 = scmp.ne.s32.totalorder %s267, %s268
      %p277 = scmp.eq.s32.totalorder %s33, 0
      %p278 = por %p276, %p277
      %p279 = scmp.ne.s32.totalorder %s267, %s268
      %p280 = scmp.eq.s32.totalorder %s34, 1
      %p281 = por %p279, %p280
      %p283 = scmp.ne.s32.totalorder %s268, %s282
      %p284 = scmp.eq.s32.totalorder %s34, 0
      %p285 = por %p283, %p284
      %s287 = sadd.s32 %s286, 1
      %p290 = scmp.eq.s32.totalorder %s28, 1
      %p291 = scmp.ne.s32.totalorder %s286, %s288
      %p292 = scmp.eq.s32.totalorder %s28, 0
      %p293 = por %p291, %p292
      %p294 = scmp.ne.s32.totalorder %s286, %s288
      %p295 = scmp.eq.s32.totalorder %s33, 1
      %p296 = por %p294, %p295
      %p297 = scmp.ne.s32.totalorder %s288, %s289
      %p298 = scmp.eq.s32.totalorder %s33, 0
      %p299 = por %p297, %p298
      %p300 = scmp.ne.s32.totalorder %s288, %s289
      %p301 = scmp.eq.s32.totalorder %s34, 1
      %p302 = por %p300, %p301
      %p304 = scmp.ne.s32.totalorder %s289, %s303
      %p305 = scmp.eq.s32.totalorder %s34, 0
      %p306 = por %p304, %p305
      %s307 = ssub.s32 %s35, %s47
      %s308 = ssub.s32 %s36, %s43
      %s309 = sor.u32 %s307, %s308
      %p310 = scmp.eq.s32.totalorder %s309, 0
      %s312 = sadd.s32 %s311, 1
      %s313 = scalar_select %p310, %s311, %s312
      %p316 = pneg %p310
      %p317 = scmp.eq.s32.totalorder %s28, 1
      %p318 = por %p316, %p317
      %p319 = scmp.ne.s32.totalorder %s311, %s314
      %p320 = scmp.eq.s32.totalorder %s28, 0
      %p321 = por %p319, %p320
      %p322 = scmp.ne.s32.totalorder %s311, %s314
      %p323 = scmp.eq.s32.totalorder %s33, 1
      %p324 = por %p322, %p323
      %p325 = scmp.ne.s32.totalorder %s314, %s315
      %p326 = scmp.eq.s32.totalorder %s33, 0
      %p327 = por %p325, %p326
      %p328 = scmp.ne.s32.totalorder %s314, %s315
      %p329 = scmp.eq.s32.totalorder %s34, 1
      %p330 = por %p328, %p329
      %p332 = scmp.ne.s32.totalorder %s315, %s331
      %p333 = scmp.eq.s32.totalorder %s34, 0
      %p334 = por %p332, %p333
      %p335 = scmp.le.s32.totalorder 1, %s28
      %p336 = scmp.lt.s32.totalorder %s28, 3
      %p337 = pnand %p335, %p336
      %p338 = pneg %p337
      // Predicated region
      $region9: #{tpu_custom_call.1} parent=5 // pred_check
        _
      $region10: #{tpu_custom_call.1} parent=5 // pred_check_branch
        %340 = sbr.rel (%p337) target = $region12
      $region11: #{tpu_custom_call.1} parent=5 // pred_region
        %s341 = ssub.s32 %s28, 1
        // Predicated region
        $region13: #{tpu_custom_call.1} parent=11 // pred_check
          %p342 = pneg %p89
        $region14: #{tpu_custom_call.1} parent=11 // pred_check_branch
          %344 = sbr.rel (%p342) target = $region16
        $region15: #{tpu_custom_call.1} parent=11 // pred_region
          _
        $region16: #{tpu_custom_call.1} parent=11 // pred_fallthru
          _
        // Predicated region
        $region17: #{tpu_custom_call.1} parent=11 // pred_check
          %p345 = pneg %p110
        $region18: #{tpu_custom_call.1} parent=11 // pred_check_branch
          %347 = sbr.rel (%p345) target = $region20
        $region19: #{tpu_custom_call.1} parent=11 // pred_region
          _
        $region20: #{tpu_custom_call.1} parent=11 // pred_fallthru
          _
        // Predicated region
        $region21: #{tpu_custom_call.1} parent=11 // pred_check
          %p348 = pneg %p131
        $region22: #{tpu_custom_call.1} parent=11 // pred_check_branch
          %350 = sbr.rel (%p348) target = $region24
        $region23: #{tpu_custom_call.1} parent=11 // pred_region
          %s352 = ssub.s32 2048, 2048
          %353 = vsyncadd [#allocation8], %s352
          %s354 = sshll.u32 [#allocation7], 4
          %s355 = int_to_ptr.vmem [resolvable:$true] %s354
          %360 = dma.hbm_to_vmem [thread:$0]  %s3, 2048, %s355, [#allocation8], 128, 128, 8
        $region24: #{tpu_custom_call.1} parent=11 // pred_fallthru
          _
        // Predicated region
        $region25: #{tpu_custom_call.1} parent=11 // pred_check
          %p361 = pneg %p152
        $region26: #{tpu_custom_call.1} parent=11 // pred_check_branch
          %363 = sbr.rel (%p361) target = $region28
        $region27: #{tpu_custom_call.1} parent=11 // pred_region
          %s365 = ssub.s32 2048, 2048
          %366 = vsyncadd [#allocation8], %s365
          %s367 = sshll.u32 [#allocation9], 4
          %s368 = int_to_ptr.vmem [resolvable:$true] %s367
          %373 = dma.hbm_to_vmem [thread:$0]  %s4, 2048, %s368, [#allocation8], 128, 128, 8
        $region28: #{tpu_custom_call.1} parent=11 // pred_fallthru
          _
        // Predicated region
        $region29: #{tpu_custom_call.1} parent=11 // pred_check
          %p374 = pneg %p173
        $region30: #{tpu_custom_call.1} parent=11 // pred_check_branch
          %376 = sbr.rel (%p374) target = $region32
        $region31: #{tpu_custom_call.1} parent=11 // pred_region
          %s378 = ssub.s32 2048, 2048
          %379 = vsyncadd [#allocation11], %s378
          %s380 = sshll.u32 [#allocation10], 4
          %s381 = int_to_ptr.vmem [resolvable:$true] %s380
          %386 = dma.hbm_to_vmem [thread:$0]  %s5, 2048, %s381, [#allocation11], 128, 128, 8
        $region32: #{tpu_custom_call.1} parent=11 // pred_fallthru
          _
        // Predicated region
        $region33: #{tpu_custom_call.1} parent=11 // pred_check
          %p387 = pneg %p194
        $region34: #{tpu_custom_call.1} parent=11 // pred_check_branch
          %389 = sbr.rel (%p387) target = $region36
        $region35: #{tpu_custom_call.1} parent=11 // pred_region
          %s391 = ssub.s32 2048, 2048
          %392 = vsyncadd [#allocation11], %s391
          %s393 = sshll.u32 [#allocation12], 4
          %s394 = int_to_ptr.vmem [resolvable:$true] %s393
          %399 = dma.hbm_to_vmem [thread:$0]  %s6, 2048, %s394, [#allocation11], 128, 128, 8
        $region36: #{tpu_custom_call.1} parent=11 // pred_fallthru
          _
        // Predicated region
        $region37: #{tpu_custom_call.1} parent=11 // pred_check
          %p400 = pneg %p215
        $region38: #{tpu_custom_call.1} parent=11 // pred_check_branch
          %402 = sbr.rel (%p400) target = $region40
        $region39: #{tpu_custom_call.1} parent=11 // pred_region
          %s404 = ssub.s32 2048, 2048
          %405 = vsyncadd [#allocation14], %s404
          %s406 = sshll.u32 [#allocation13], 4
          %s407 = int_to_ptr.vmem [resolvable:$true] %s406
          %412 = dma.hbm_to_vmem [thread:$0]  %s7, 2048, %s407, [#allocation14], 128, 128, 8
        $region40: #{tpu_custom_call.1} parent=11 // pred_fallthru
          _
        // Predicated region
        $region41: #{tpu_custom_call.1} parent=11 // pred_check
          %p413 = pneg %p236
        $region42: #{tpu_custom_call.1} parent=11 // pred_check_branch
          %415 = sbr.rel (%p413) target = $region44
        $region43: #{tpu_custom_call.1} parent=11 // pred_region
          %s417 = ssub.s32 2048, 2048
          %418 = vsyncadd [#allocation14], %s417
          %s419 = sshll.u32 [#allocation15], 4
          %s420 = int_to_ptr.vmem [resolvable:$true] %s419
          %425 = dma.hbm_to_vmem [thread:$0]  %s8, 2048, %s420, [#allocation14], 128, 128, 8
        $region44: #{tpu_custom_call.1} parent=11 // pred_fallthru
          _
        // Predicated region
        $region45: #{tpu_custom_call.1} parent=11 // pred_check
          %p426 = pneg %p257
        $region46: #{tpu_custom_call.1} parent=11 // pred_check_branch
          %428 = sbr.rel (%p426) target = $region48
        $region47: #{tpu_custom_call.1} parent=11 // pred_region
          _
        $region48: #{tpu_custom_call.1} parent=11 // pred_fallthru
          _
        // Predicated region
        $region49: #{tpu_custom_call.1} parent=11 // pred_check
          %p429 = pneg %p278
        $region50: #{tpu_custom_call.1} parent=11 // pred_check_branch
          %431 = sbr.rel (%p429) target = $region52
        $region51: #{tpu_custom_call.1} parent=11 // pred_region
          %s433 = ssub.s32 2048, 2048
          %434 = vsyncadd [#allocation17], %s433
          %s435 = sshll.u32 [#allocation16], 4
          %s436 = int_to_ptr.vmem [resolvable:$true] %s435
          %441 = dma.hbm_to_vmem [thread:$0]  %s10, 2048, %s436, [#allocation17], 128, 128, 8
        $region52: #{tpu_custom_call.1} parent=11 // pred_fallthru
          _
        // Predicated region
        $region53: #{tpu_custom_call.1} parent=11 // pred_check
          %p442 = pneg %p299
        $region54: #{tpu_custom_call.1} parent=11 // pred_check_branch
          %444 = sbr.rel (%p442) target = $region56
        $region55: #{tpu_custom_call.1} parent=11 // pred_region
          _
        $region56: #{tpu_custom_call.1} parent=11 // pred_fallthru
          _
      $region12: #{tpu_custom_call.1} parent=5 // pred_fallthru
        _
      %p445 = scmp.lt.s32.totalorder %s28, 2
      // Predicated region
      $region57: #{tpu_custom_call.1} parent=5 // pred_check
        %p446 = pneg %p445
      $region58: #{tpu_custom_call.1} parent=5 // pred_check_branch
        %448 = sbr.rel (%p446) target = $region60
      $region59: #{tpu_custom_call.1} parent=5 // pred_region
        // Predicated region
        $region61: #{tpu_custom_call.1} parent=59 // pred_check
          %p449 = pneg %p62
        $region62: #{tpu_custom_call.1} parent=59 // pred_check_branch
          %451 = sbr.rel (%p449) target = $region64
        $region63: #{tpu_custom_call.1} parent=59 // pred_region
          %s452 = sand.u32 %s52, 1
          %s453 = scalar_lea.sflag [#allocation5], %s452
          %s454 = sand.u32 %s52, 1
          %s455 = smul.addr %s454, 8
          %s456 = scalar_lea.vmem [#allocation4], %s455
          %s458 = ssub.s32 128, 128
          %459 = vsyncadd %s453, %s458
          %s460 = sadd.s32 %s36, %s35
          %s461 = smul.addr %s460, 128
          %s462 = scalar_lea.hbm %s0, %s461
          %s464 = sshll.u32 %s456, 4
          %s465 = int_to_ptr.vmem [resolvable:$true] %s464
          %467 = dma.hbm_to_vmem [thread:$0]  %s462, 128, %s465, %s453
        $region64: #{tpu_custom_call.1} parent=59 // pred_fallthru
          _
      $region60: #{tpu_custom_call.1} parent=5 // pred_fallthru
        _
      %p468 = scmp.le.s32.totalorder 1, %s28
      %p469 = scmp.lt.s32.totalorder %s28, 3
      %p470 = pnand %p468, %p469
      %p471 = pneg %p470
      // Predicated region
      $region65: #{tpu_custom_call.1} parent=5 // pred_check
        _
      $region66: #{tpu_custom_call.1} parent=5 // pred_check_branch
        %473 = sbr.rel (%p470) target = $region68
      $region67: #{tpu_custom_call.1} parent=5 // pred_region
        %s474 = ssub.s32 %s28, 1
        %s475 = sand.u32 %s55, 1
        %s476 = scalar_lea.sflag [#allocation5], %s475
        %s477 = sand.u32 %s55, 1
        %s478 = smul.addr %s477, 8
        %s479 = scalar_lea.vmem [#allocation4], %s478
        // Predicated region
        $region69: #{tpu_custom_call.1} parent=67 // pred_check
          %p480 = pneg %p68
        $region70: #{tpu_custom_call.1} parent=67 // pred_check_branch
          %482 = sbr.rel (%p480) target = $region72
        $region71: #{tpu_custom_call.1} parent=67 // pred_region
          %483 = dma.done %s476, 128
        $region72: #{tpu_custom_call.1} parent=67 // pred_fallthru
          _
        // Predicated region
        $region73: #{tpu_custom_call.1} parent=67 // pred_check
          %p484 = pneg %p131
        $region74: #{tpu_custom_call.1} parent=67 // pred_check_branch
          %486 = sbr.rel (%p484) target = $region76
        $region75: #{tpu_custom_call.1} parent=67 // pred_region
          %487 = dma.done [#allocation8], 2048
        $region76: #{tpu_custom_call.1} parent=67 // pred_fallthru
          _
        // Predicated region
        $region77: #{tpu_custom_call.1} parent=67 // pred_check
          %p488 = pneg %p152
        $region78: #{tpu_custom_call.1} parent=67 // pred_check_branch
          %490 = sbr.rel (%p488) target = $region80
        $region79: #{tpu_custom_call.1} parent=67 // pred_region
          %491 = dma.done [#allocation8], 2048
        $region80: #{tpu_custom_call.1} parent=67 // pred_fallthru
          _
        // Predicated region
        $region81: #{tpu_custom_call.1} parent=67 // pred_check
          %p492 = pneg %p173
        $region82: #{tpu_custom_call.1} parent=67 // pred_check_branch
          %494 = sbr.rel (%p492) target = $region84
        $region83: #{tpu_custom_call.1} parent=67 // pred_region
          %495 = dma.done [#allocation11], 2048
        $region84: #{tpu_custom_call.1} parent=67 // pred_fallthru
          _
        // Predicated region
        $region85: #{tpu_custom_call.1} parent=67 // pred_check
          %p496 = pneg %p194
        $region86: #{tpu_custom_call.1} parent=67 // pred_check_branch
          %498 = sbr.rel (%p496) target = $region88
        $region87: #{tpu_custom_call.1} parent=67 // pred_region
          %499 = dma.done [#allocation11], 2048
        $region88: #{tpu_custom_call.1} parent=67 // pred_fallthru
          _
        // Predicated region
        $region89: #{tpu_custom_call.1} parent=67 // pred_check
          %p500 = pneg %p215
        $region90: #{tpu_custom_call.1} parent=67 // pred_check_branch
          %502 = sbr.rel (%p500) target = $region92
        $region91: #{tpu_custom_call.1} parent=67 // pred_region
          %503 = dma.done [#allocation14], 2048
        $region92: #{tpu_custom_call.1} parent=67 // pred_fallthru
          _
        // Predicated region
        $region93: #{tpu_custom_call.1} parent=67 // pred_check
          %p504 = pneg %p236
        $region94: #{tpu_custom_call.1} parent=67 // pred_check_branch
          %506 = sbr.rel (%p504) target = $region96
        $region95: #{tpu_custom_call.1} parent=67 // pred_region
          %507 = dma.done [#allocation14], 2048
        $region96: #{tpu_custom_call.1} parent=67 // pred_fallthru
          _
        // Predicated region
        $region97: #{tpu_custom_call.1} parent=67 // pred_check
          %p508 = pneg %p278
        $region98: #{tpu_custom_call.1} parent=67 // pred_check_branch
          %510 = sbr.rel (%p508) target = $region100
        $region99: #{tpu_custom_call.1} parent=67 // pred_region
          %511 = dma.done [#allocation17], 2048
        $region100: #{tpu_custom_call.1} parent=67 // pred_fallthru
          _
        %s512 = sand.u32 %s55, 1
        %s513 = scalar_lea.sflag [#allocation5], %s512
        %s514 = sand.u32 %s55, 1
        %s515 = smul.addr %s514, 8
        %s516 = scalar_lea.vmem [#allocation4], %s515
        %p517 = pneg %p68
        %p518 = pneg %p65
        %p519 = pneg %p89
        %p520 = pneg %p86
        %p521 = pneg %p110
        %p522 = pneg %p107
        %p523 = pneg %p131
        %p524 = pneg %p128
        %p525 = pneg %p152
        %p526 = pneg %p149
        %p527 = pneg %p173
        %p528 = pneg %p170
        %p529 = pneg %p194
        %p530 = pneg %p191
        %p531 = pneg %p215
        %p532 = pneg %p212
        %p533 = pneg %p236
        %p534 = pneg %p233
        %p535 = pneg %p257
        %p536 = pneg %p254
        %p537 = pneg %p278
        %p538 = pneg %p275
        %p539 = pneg %p299
        %p540 = pneg %p296
        %p541 = pneg %p327
        %p542 = pneg %p324
        %s543 = sand.u32 %s314, 1
        %s544 = scalar_lea.sflag [#allocation6], %s543
        %s545 = sand.u32 %s314, 1
        %s546 = smul.addr %s545, 8
        %s547 = scalar_lea.vmem [#allocation18], %s546
        %p548 = scmp.eq.s32.totalorder %s38, 0
        // Predicated region
        $region101: #{tpu_custom_call.1} parent=67 // pred_check
          %p549 = pneg %p548
        $region102: #{tpu_custom_call.1} parent=67 // pred_check_branch
          %551 = sbr.rel (%p549) target = $region104
        $region103: #{tpu_custom_call.1} parent=67 // pred_region
          %552 = vst [vmem:[#allocation2] sm:$0x1] 0.0
          %553 = vst [vmem:[#allocation3] sm:$0x1] 0.0
        $region104: #{tpu_custom_call.1} parent=67 // pred_fallthru
          _
        %v554 = vld [vmem:[%s479] sm:$0xff]
        %v555 = vld [vmem:[%s1] sm:$0x1]
        %v556 = vld [vmem:[%s2] sm:$0x1]
        %v557 = vld [vmem:[#allocation7] sm:$0xff]
        %v558 = vld [vmem:[#allocation7 + $0x8] sm:$0xff]
        %v559 = vld [vmem:[#allocation7 + $0x10] sm:$0xff]
        %v560 = vld [vmem:[#allocation7 + $0x18] sm:$0xff]
        %v561 = vld [vmem:[#allocation7 + $0x20] sm:$0xff]
        %v562 = vld [vmem:[#allocation7 + $0x28] sm:$0xff]
        %v563 = vld [vmem:[#allocation7 + $0x30] sm:$0xff]
        %v564 = vld [vmem:[#allocation7 + $0x38] sm:$0xff]
        %v565 = vld [vmem:[#allocation7 + $0x40] sm:$0xff]
        %v566 = vld [vmem:[#allocation7 + $0x48] sm:$0xff]
        %v567 = vld [vmem:[#allocation7 + $0x50] sm:$0xff]
        %v568 = vld [vmem:[#allocation7 + $0x58] sm:$0xff]
        %v569 = vld [vmem:[#allocation7 + $0x60] sm:$0xff]
        %v570 = vld [vmem:[#allocation7 + $0x68] sm:$0xff]
        %v571 = vld [vmem:[#allocation7 + $0x70] sm:$0xff]
        %v572 = vld [vmem:[#allocation7 + $0x78] sm:$0xff]
        %573 = vmatprep.subr.mxu0 0.0
        %574 = vmatpush1.msra.mxu0 %v557
        %575 = vmatprep.subr.mxu0 0.0
        %576 = vmatpush1.msra.mxu0 %v558
        %577 = vmatprep.subr.mxu0 0.0
        %578 = vmatpush1.msra.mxu0 %v559
        %579 = vmatprep.subr.mxu0 0.0
        %580 = vmatpush1.msra.mxu0 %v560
        %581 = vmatprep.subr.mxu0 0.0
        %582 = vmatpush1.msra.mxu0 %v561
        %583 = vmatprep.subr.mxu0 0.0
        %584 = vmatpush1.msra.mxu0 %v562
        %585 = vmatprep.subr.mxu0 0.0
        %586 = vmatpush1.msra.mxu0 %v563
        %587 = vmatprep.subr.mxu0 0.0
        %588 = vmatpush1.msra.mxu0 %v564
        %589 = vmatprep.subr.mxu0 0.0
        %590 = vmatpush1.msra.mxu0 %v565
        %591 = vmatprep.subr.mxu0 0.0
        %592 = vmatpush1.msra.mxu0 %v566
        %593 = vmatprep.subr.mxu0 0.0
        %594 = vmatpush1.msra.mxu0 %v567
        %595 = vmatprep.subr.mxu0 0.0
        %596 = vmatpush1.msra.mxu0 %v568
        %597 = vmatprep.subr.mxu0 0.0
        %598 = vmatpush1.msra.mxu0 %v569
        %599 = vmatprep.subr.mxu0 0.0
        %600 = vmatpush1.msra.mxu0 %v570
        %601 = vmatprep.subr.mxu0 0.0
        %602 = vmatpush1.msra.mxu0 %v571
        %603 = vmatprep.subr.mxu0 0.0
        %604 = vmatpush1.msra.mxu0 %v572
        %605 = vmatprep.subr.mxu0 0.0
        %606 = vmatpush1.msra.mxu0 0.0
        %607 = vmatprep.subr.mxu0 0.0
        %608 = vmatpush1.msra.mxu0 0.0
        %609 = vmatprep.subr.mxu0 0.0
        %610 = vmatpush1.msra.mxu0 0.0
        %611 = vmatprep.subr.mxu0 0.0
        %612 = vmatpush1.msra.mxu0 0.0
        %613 = vmatprep.subr.mxu0 0.0
        %614 = vmatpush1.msra.mxu0 0.0
        %615 = vmatprep.subr.mxu0 0.0
        %616 = vmatpush1.msra.mxu0 0.0
        %617 = vmatprep.subr.mxu0 0.0
        %618 = vmatpush1.msra.mxu0 0.0
        %619 = vmatprep.subr.mxu0 0.0
        %620 = vmatpush1.msra.mxu0 0.0
        %621 = vmatprep.subr.mxu0 0.0
        %622 = vmatpush1.msra.mxu0 0.0
        %623 = vmatprep.subr.mxu0 0.0
        %624 = vmatpush1.msra.mxu0 0.0
        %625 = vmatprep.subr.mxu0 0.0
        %626 = vmatpush1.msra.mxu0 0.0
        %627 = vmatprep.subr.mxu0 0.0
        %628 = vmatpush1.msra.mxu0 0.0
        %629 = vmatprep.subr.mxu0 0.0
        %630 = vmatpush1.msra.mxu0 0.0
        %631 = vmatprep.subr.mxu0 0.0
        %632 = vmatpush1.msra.mxu0 0.0
        %633 = vmatprep.subr.mxu0 0.0
        %634 = vmatpush1.msra.mxu0 0.0
        %635 = vmatprep.subr.mxu0 0.0
        %636 = vmatpush1.msra.mxu0 0.0
        %637 = vmatprep.mubr.f32.mxu0 0.0
        %638 = vmatmul.mubr.f32.gmra.mrb[0].mxu0 %v554
        %v639 = vpop.f32.mrb[0].mxu0
        %v640 = vadd.f32 0.0, %v639
        %v641 = vpop.f32.mrb[0].mxu0
        %642 = vdwg.mxu0
        %v643 = vld [vmem:[#allocation9] sm:$0xff]
        %v644 = vld [vmem:[#allocation9 + $0x8] sm:$0xff]
        %v645 = vld [vmem:[#allocation9 + $0x10] sm:$0xff]
        %v646 = vld [vmem:[#allocation9 + $0x18] sm:$0xff]
        %v647 = vld [vmem:[#allocation9 + $0x20] sm:$0xff]
        %v648 = vld [vmem:[#allocation9 + $0x28] sm:$0xff]
        %v649 = vld [vmem:[#allocation9 + $0x30] sm:$0xff]
        %v650 = vld [vmem:[#allocation9 + $0x38] sm:$0xff]
        %v651 = vld [vmem:[#allocation9 + $0x40] sm:$0xff]
        %v652 = vld [vmem:[#allocation9 + $0x48] sm:$0xff]
        %v653 = vld [vmem:[#allocation9 + $0x50] sm:$0xff]
        %v654 = vld [vmem:[#allocation9 + $0x58] sm:$0xff]
        %v655 = vld [vmem:[#allocation9 + $0x60] sm:$0xff]
        %v656 = vld [vmem:[#allocation9 + $0x68] sm:$0xff]
        %v657 = vld [vmem:[#allocation9 + $0x70] sm:$0xff]
        %v658 = vld [vmem:[#allocation9 + $0x78] sm:$0xff]
        %659 = vmatprep.subr.mxu0 0.0
        %660 = vmatpush1.msra.mxu0 %v643
        %661 = vmatprep.subr.mxu0 0.0
        %662 = vmatpush1.msra.mxu0 %v644
        %663 = vmatprep.subr.mxu0 0.0
        %664 = vmatpush1.msra.mxu0 %v645
        %665 = vmatprep.subr.mxu0 0.0
        %666 = vmatpush1.msra.mxu0 %v646
        %667 = vmatprep.subr.mxu0 0.0
        %668 = vmatpush1.msra.mxu0 %v647
        %669 = vmatprep.subr.mxu0 0.0
        %670 = vmatpush1.msra.mxu0 %v648
        %671 = vmatprep.subr.mxu0 0.0
        %672 = vmatpush1.msra.mxu0 %v649
        %673 = vmatprep.subr.mxu0 0.0
        %674 = vmatpush1.msra.mxu0 %v650
        %675 = vmatprep.subr.mxu0 0.0
        %676 = vmatpush1.msra.mxu0 %v651
        %677 = vmatprep.subr.mxu0 0.0
        %678 = vmatpush1.msra.mxu0 %v652
        %679 = vmatprep.subr.mxu0 0.0
        %680 = vmatpush1.msra.mxu0 %v653
        %681 = vmatprep.subr.mxu0 0.0
        %682 = vmatpush1.msra.mxu0 %v654
        %683 = vmatprep.subr.mxu0 0.0
        %684 = vmatpush1.msra.mxu0 %v655
        %685 = vmatprep.subr.mxu0 0.0
        %686 = vmatpush1.msra.mxu0 %v656
        %687 = vmatprep.subr.mxu0 0.0
        %688 = vmatpush1.msra.mxu0 %v657
        %689 = vmatprep.subr.mxu0 0.0
        %690 = vmatpush1.msra.mxu0 %v658
        %691 = vmatprep.subr.mxu0 0.0
        %692 = vmatpush1.msra.mxu0 0.0
        %693 = vmatprep.subr.mxu0 0.0
        %694 = vmatpush1.msra.mxu0 0.0
        %695 = vmatprep.subr.mxu0 0.0
        %696 = vmatpush1.msra.mxu0 0.0
        %697 = vmatprep.subr.mxu0 0.0
        %698 = vmatpush1.msra.mxu0 0.0
        %699 = vmatprep.subr.mxu0 0.0
        %700 = vmatpush1.msra.mxu0 0.0
        %701 = vmatprep.subr.mxu0 0.0
        %702 = vmatpush1.msra.mxu0 0.0
        %703 = vmatprep.subr.mxu0 0.0
        %704 = vmatpush1.msra.mxu0 0.0
        %705 = vmatprep.subr.mxu0 0.0
        %706 = vmatpush1.msra.mxu0 0.0
        %707 = vmatprep.subr.mxu0 0.0
        %708 = vmatpush1.msra.mxu0 0.0
        %709 = vmatprep.subr.mxu0 0.0
        %710 = vmatpush1.msra.mxu0 0.0
        %711 = vmatprep.subr.mxu0 0.0
        %712 = vmatpush1.msra.mxu0 0.0
        %713 = vmatprep.subr.mxu0 0.0
        %714 = vmatpush1.msra.mxu0 0.0
        %715 = vmatprep.subr.mxu0 0.0
        %716 = vmatpush1.msra.mxu0 0.0
        %717 = vmatprep.subr.mxu0 0.0
        %718 = vmatpush1.msra.mxu0 0.0
        %719 = vmatprep.subr.mxu0 0.0
        %720 = vmatpush1.msra.mxu0 0.0
        %721 = vmatprep.subr.mxu0 0.0
        %722 = vmatpush1.msra.mxu0 0.0
        %723 = vmatprep.mubr.f32.mxu0 0.0
        %724 = vmatmul.mubr.f32.gmra.mrb[0].mxu0 %v554
        %v725 = vpop.f32.mrb[0].mxu0
        %v726 = vadd.f32 0.0, %v725
        %v727 = vpop.f32.mrb[0].mxu0
        %728 = vdwg.mxu0
        %v729 = vld [vmem:[#allocation2] sm:$0x1]
        %v730 = vld [vmem:[#allocation3] sm:$0x1]
        %v731 = vmul.f32 %v555, %v729
        %v732 = vmul.f32 %v556, %v730
        %v733 = vsub.f32 %v731, %v732
        %v734 = vmul.f32 %v555, %v730
        %v735 = vmul.f32 %v556, %v729
        %v736 = vadd.f32 %v734, %v735
        %v737 = vlaneseq
        %v738 = vshrl.u32 %v737, 7
        %vm739 = vcmp.eq.s32.totalorder %v738, 0
        %v741 = vlaneseq
        %v742 = vshrl.u32 %v741, 7
        %v743 = vsub.s32 0, %v742
        %v744 = vrot.slane %v733, %v743
        %v746 = vadd.f32 %v640, %v744
        %v747 = vsel %vm739, 1, 0
        %vm748 = vcmp.eq.s32.totalorder %v747, 1
        %v749 = vsel %vm748, %v746, %v640
        %v751 = vlaneseq
        %v752 = vshrl.u32 %v751, 7
        %v753 = vsub.s32 0, %v752
        %v754 = vrot.slane %v736, %v753
        %v756 = vadd.f32 %v726, %v754
        %v757 = vsel %vm748, %v756, %v726
        %v759 = vrot.slane %v749, 7
        %vm761 = vcmask 1040384
        %v762 = vsel %vm761, 0.0, %v759
        %v764 = vrot.slane %v757, 7
        %v766 = vsel %vm761, 0.0, %v764
        %v768 = vlaneseq
        %v769 = vshrl.u32 %v768, 7
        %v770 = vsub.s32 0, %v769
        %v771 = vrot.slane %v555, %v770
        %v773 = vmul.f32 %v771, %v762
        %v775 = vlaneseq
        %v776 = vshrl.u32 %v775, 7
        %v777 = vsub.s32 0, %v776
        %v778 = vrot.slane %v556, %v777
        %v780 = vmul.f32 %v778, %v766
        %v781 = vsub.f32 %v773, %v780
        %v782 = vadd.f32 %v749, %v781
        %v783 = vmul.f32 %v771, %v766
        %v784 = vmul.f32 %v778, %v762
        %v785 = vadd.f32 %v783, %v784
        %v786 = vadd.f32 %v757, %v785
        %v787 = vmul.f32 %v555, %v555
        %v788 = vmul.f32 %v556, %v556
        %v789 = vsub.f32 %v787, %v788
        %v790 = vmul.f32 %v555, 2.0
        %v791 = vmul.f32 %v790, %v556
        %v793 = vrot.slane %v782, 6
        %vm795 = vcmask 1041408
        %v796 = vsel %vm795, 0.0, %v793
        %v798 = vrot.slane %v786, 6
        %v800 = vsel %vm795, 0.0, %v798
        %v802 = vlaneseq
        %v803 = vshrl.u32 %v802, 7
        %v804 = vsub.s32 0, %v803
        %v805 = vrot.slane %v789, %v804
        %v807 = vmul.f32 %v805, %v796
        %v809 = vlaneseq
        %v810 = vshrl.u32 %v809, 7
        %v811 = vsub.s32 0, %v810
        %v812 = vrot.slane %v791, %v811
        %v814 = vmul.f32 %v812, %v800
        %v815 = vsub.f32 %v807, %v814
        %v816 = vadd.f32 %v782, %v815
        %v817 = vmul.f32 %v805, %v800
        %v818 = vmul.f32 %v812, %v796
        %v819 = vadd.f32 %v817, %v818
        %v820 = vadd.f32 %v786, %v819
        %v821 = vmul.f32 %v789, %v789
        %v822 = vmul.f32 %v791, %v791
        %v823 = vsub.f32 %v821, %v822
        %v824 = vmul.f32 %v789, 2.0
        %v825 = vmul.f32 %v824, %v791
        %v827 = vrot.slane %v816, 4
        %vm829 = vcmask 1043456
        %v830 = vsel %vm829, 0.0, %v827
        %v832 = vrot.slane %v820, 4
        %v834 = vsel %vm829, 0.0, %v832
        %v836 = vlaneseq
        %v837 = vshrl.u32 %v836, 7
        %v838 = vsub.s32 0, %v837
        %v839 = vrot.slane %v823, %v838
        %v841 = vmul.f32 %v839, %v830
        %v843 = vlaneseq
        %v844 = vshrl.u32 %v843, 7
        %v845 = vsub.s32 0, %v844
        %v846 = vrot.slane %v825, %v845
        %v848 = vmul.f32 %v846, %v834
        %v849 = vsub.f32 %v841, %v848
        %v850 = vadd.f32 %v816, %v849
        %v851 = vmul.f32 %v839, %v834
        %v852 = vmul.f32 %v846, %v830
        %v853 = vadd.f32 %v851, %v852
        %v854 = vadd.f32 %v820, %v853
        %855 = vst [vmem:[#allocation2 - $0x7] sm:$0x80] %v850
        %856 = vst [vmem:[#allocation3 - $0x7] sm:$0x80] %v854
        %v857 = vld [vmem:[#allocation10] sm:$0xff]
        %v858 = vld [vmem:[#allocation10 + $0x8] sm:$0xff]
        %v859 = vld [vmem:[#allocation10 + $0x10] sm:$0xff]
        %v860 = vld [vmem:[#allocation10 + $0x18] sm:$0xff]
        %v861 = vld [vmem:[#allocation10 + $0x20] sm:$0xff]
        %v862 = vld [vmem:[#allocation10 + $0x28] sm:$0xff]
        %v863 = vld [vmem:[#allocation10 + $0x30] sm:$0xff]
        %v864 = vld [vmem:[#allocation10 + $0x38] sm:$0xff]
        %v865 = vld [vmem:[#allocation10 + $0x40] sm:$0xff]
        %v866 = vld [vmem:[#allocation10 + $0x48] sm:$0xff]
        %v867 = vld [vmem:[#allocation10 + $0x50] sm:$0xff]
        %v868 = vld [vmem:[#allocation10 + $0x58] sm:$0xff]
        %v869 = vld [vmem:[#allocation10 + $0x60] sm:$0xff]
        %v870 = vld [vmem:[#allocation10 + $0x68] sm:$0xff]
        %v871 = vld [vmem:[#allocation10 + $0x70] sm:$0xff]
        %v872 = vld [vmem:[#allocation10 + $0x78] sm:$0xff]
        %v873 = vld [vmem:[#allocation12] sm:$0xff]
        %v874 = vld [vmem:[#allocation12 + $0x8] sm:$0xff]
        %v875 = vld [vmem:[#allocation12 + $0x10] sm:$0xff]
        %v876 = vld [vmem:[#allocation12 + $0x18] sm:$0xff]
        %v877 = vld [vmem:[#allocation12 + $0x20] sm:$0xff]
        %v878 = vld [vmem:[#allocation12 + $0x28] sm:$0xff]
        %v879 = vld [vmem:[#allocation12 + $0x30] sm:$0xff]
        %v880 = vld [vmem:[#allocation12 + $0x38] sm:$0xff]
        %v881 = vld [vmem:[#allocation12 + $0x40] sm:$0xff]
        %v882 = vld [vmem:[#allocation12 + $0x48] sm:$0xff]
        %v883 = vld [vmem:[#allocation12 + $0x50] sm:$0xff]
        %v884 = vld [vmem:[#allocation12 + $0x58] sm:$0xff]
        %v885 = vld [vmem:[#allocation12 + $0x60] sm:$0xff]
        %v886 = vld [vmem:[#allocation12 + $0x68] sm:$0xff]
        %v887 = vld [vmem:[#allocation12 + $0x70] sm:$0xff]
        %v888 = vld [vmem:[#allocation12 + $0x78] sm:$0xff]
        %889 = vmatprep.subr.mxu0 0.0
        %890 = vmatpush1.msra.mxu0 %v873
        %891 = vmatprep.subr.mxu0 0.0
        %892 = vmatpush1.msra.mxu0 %v874
        %893 = vmatprep.subr.mxu0 0.0
        %894 = vmatpush1.msra.mxu0 %v875
        %895 = vmatprep.subr.mxu0 0.0
        %896 = vmatpush1.msra.mxu0 %v876
        %897 = vmatprep.subr.mxu0 0.0
        %898 = vmatpush1.msra.mxu0 %v877
        %899 = vmatprep.subr.mxu0 0.0
        %900 = vmatpush1.msra.mxu0 %v878
        %901 = vmatprep.subr.mxu0 0.0
        %902 = vmatpush1.msra.mxu0 %v879
        %903 = vmatprep.subr.mxu0 0.0
        %904 = vmatpush1.msra.mxu0 %v880
        %905 = vmatprep.subr.mxu0 0.0
        %906 = vmatpush1.msra.mxu0 %v881
        %907 = vmatprep.subr.mxu0 0.0
        %908 = vmatpush1.msra.mxu0 %v882
        %909 = vmatprep.subr.mxu0 0.0
        %910 = vmatpush1.msra.mxu0 %v883
        %911 = vmatprep.subr.mxu0 0.0
        %912 = vmatpush1.msra.mxu0 %v884
        %913 = vmatprep.subr.mxu0 0.0
        %914 = vmatpush1.msra.mxu0 %v885
        %915 = vmatprep.subr.mxu0 0.0
        %916 = vmatpush1.msra.mxu0 %v886
        %917 = vmatprep.subr.mxu0 0.0
        %918 = vmatpush1.msra.mxu0 %v887
        %919 = vmatprep.subr.mxu0 0.0
        %920 = vmatpush1.msra.mxu0 %v888
        %921 = vmatprep.subr.mxu0 0.0
        %922 = vmatpush1.msra.mxu0 0.0
        %923 = vmatprep.subr.mxu0 0.0
        %924 = vmatpush1.msra.mxu0 0.0
        %925 = vmatprep.subr.mxu0 0.0
        %926 = vmatpush1.msra.mxu0 0.0
        %927 = vmatprep.subr.mxu0 0.0
        %928 = vmatpush1.msra.mxu0 0.0
        %929 = vmatprep.subr.mxu0 0.0
        %930 = vmatpush1.msra.mxu0 0.0
        %931 = vmatprep.subr.mxu0 0.0
        %932 = vmatpush1.msra.mxu0 0.0
        %933 = vmatprep.subr.mxu0 0.0
        %934 = vmatpush1.msra.mxu0 0.0
        %935 = vmatprep.subr.mxu0 0.0
        %936 = vmatpush1.msra.mxu0 0.0
        %937 = vmatprep.subr.mxu0 0.0
        %938 = vmatpush1.msra.mxu0 0.0
        %939 = vmatprep.subr.mxu0 0.0
        %940 = vmatpush1.msra.mxu0 0.0
        %941 = vmatprep.subr.mxu0 0.0
        %942 = vmatpush1.msra.mxu0 0.0
        %943 = vmatprep.subr.mxu0 0.0
        %944 = vmatpush1.msra.mxu0 0.0
        %945 = vmatprep.subr.mxu0 0.0
        %946 = vmatpush1.msra.mxu0 0.0
        %947 = vmatprep.subr.mxu0 0.0
        %948 = vmatpush1.msra.mxu0 0.0
        %949 = vmatprep.subr.mxu0 0.0
        %950 = vmatpush1.msra.mxu0 0.0
        %951 = vmatprep.subr.mxu0 0.0
        %952 = vmatpush1.msra.mxu0 0.0
        %953 = vmatprep.mubr.f32.mxu0 0.0
        %954 = vmatmul.mubr.f32.gmra.mrb[0].mxu0 %v854
        %v955 = vpop.f32.mrb[0].mxu0
        %v956 = vadd.f32 0.0, %v955
        %v957 = vpop.f32.mrb[0].mxu0
        %958 = vdwg.mxu0
        %959 = vmatprep.subr.mxu0 0.0
        %960 = vmatpush1.msra.mxu0 %v857
        %961 = vmatprep.subr.mxu0 0.0
        %962 = vmatpush1.msra.mxu0 %v858
        %963 = vmatprep.subr.mxu0 0.0
        %964 = vmatpush1.msra.mxu0 %v859
        %965 = vmatprep.subr.mxu0 0.0
        %966 = vmatpush1.msra.mxu0 %v860
        %967 = vmatprep.subr.mxu0 0.0
        %968 = vmatpush1.msra.mxu0 %v861
        %969 = vmatprep.subr.mxu0 0.0
        %970 = vmatpush1.msra.mxu0 %v862
        %971 = vmatprep.subr.mxu0 0.0
        %972 = vmatpush1.msra.mxu0 %v863
        %973 = vmatprep.subr.mxu0 0.0
        %974 = vmatpush1.msra.mxu0 %v864
        %975 = vmatprep.subr.mxu0 0.0
        %976 = vmatpush1.msra.mxu0 %v865
        %977 = vmatprep.subr.mxu0 0.0
        %978 = vmatpush1.msra.mxu0 %v866
        %979 = vmatprep.subr.mxu0 0.0
        %980 = vmatpush1.msra.mxu0 %v867
        %981 = vmatprep.subr.mxu0 0.0
        %982 = vmatpush1.msra.mxu0 %v868
        %983 = vmatprep.subr.mxu0 0.0
        %984 = vmatpush1.msra.mxu0 %v869
        %985 = vmatprep.subr.mxu0 0.0
        %986 = vmatpush1.msra.mxu0 %v870
        %987 = vmatprep.subr.mxu0 0.0
        %988 = vmatpush1.msra.mxu0 %v871
        %989 = vmatprep.subr.mxu0 0.0
        %990 = vmatpush1.msra.mxu0 %v872
        %991 = vmatprep.subr.mxu0 0.0
        %992 = vmatpush1.msra.mxu0 0.0
        %993 = vmatprep.subr.mxu0 0.0
        %994 = vmatpush1.msra.mxu0 0.0
        %995 = vmatprep.subr.mxu0 0.0
        %996 = vmatpush1.msra.mxu0 0.0
        %997 = vmatprep.subr.mxu0 0.0
        %998 = vmatpush1.msra.mxu0 0.0
        %999 = vmatprep.subr.mxu0 0.0
        %1000 = vmatpush1.msra.mxu0 0.0
        %1001 = vmatprep.subr.mxu0 0.0
        %1002 = vmatpush1.msra.mxu0 0.0
        %1003 = vmatprep.subr.mxu0 0.0
        %1004 = vmatpush1.msra.mxu0 0.0
        %1005 = vmatprep.subr.mxu0 0.0
        %1006 = vmatpush1.msra.mxu0 0.0
        %1007 = vmatprep.subr.mxu0 0.0
        %1008 = vmatpush1.msra.mxu0 0.0
        %1009 = vmatprep.subr.mxu0 0.0
        %1010 = vmatpush1.msra.mxu0 0.0
        %1011 = vmatprep.subr.mxu0 0.0
        %1012 = vmatpush1.msra.mxu0 0.0
        %1013 = vmatprep.subr.mxu0 0.0
        %1014 = vmatpush1.msra.mxu0 0.0
        %1015 = vmatprep.subr.mxu0 0.0
        %1016 = vmatpush1.msra.mxu0 0.0
        %1017 = vmatprep.subr.mxu0 0.0
        %1018 = vmatpush1.msra.mxu0 0.0
        %1019 = vmatprep.subr.mxu0 0.0
        %1020 = vmatpush1.msra.mxu0 0.0
        %1021 = vmatprep.subr.mxu0 0.0
        %1022 = vmatpush1.msra.mxu0 0.0
        %1023 = vmatprep.mubr.f32.mxu0 0.0
        %1024 = vmatmul.mubr.f32.gmra.mrb[0].mxu0 %v850
        %v1025 = vpop.f32.mrb[0].mxu0
        %v1026 = vadd.f32 %v956, %v1025
        %v1027 = vpop.f32.mrb[0].mxu0
        %1028 = vdwg.mxu0
        %v1029 = vld [vmem:[#allocation13] sm:$0xff]
        %v1030 = vld [vmem:[#allocation13 + $0x8] sm:$0xff]
        %v1031 = vld [vmem:[#allocation13 + $0x10] sm:$0xff]
        %v1032 = vld [vmem:[#allocation13 + $0x18] sm:$0xff]
        %v1033 = vld [vmem:[#allocation13 + $0x20] sm:$0xff]
        %v1034 = vld [vmem:[#allocation13 + $0x28] sm:$0xff]
        %v1035 = vld [vmem:[#allocation13 + $0x30] sm:$0xff]
        %v1036 = vld [vmem:[#allocation13 + $0x38] sm:$0xff]
        %v1037 = vld [vmem:[#allocation13 + $0x40] sm:$0xff]
        %v1038 = vld [vmem:[#allocation13 + $0x48] sm:$0xff]
        %v1039 = vld [vmem:[#allocation13 + $0x50] sm:$0xff]
        %v1040 = vld [vmem:[#allocation13 + $0x58] sm:$0xff]
        %v1041 = vld [vmem:[#allocation13 + $0x60] sm:$0xff]
        %v1042 = vld [vmem:[#allocation13 + $0x68] sm:$0xff]
        %v1043 = vld [vmem:[#allocation13 + $0x70] sm:$0xff]
        %v1044 = vld [vmem:[#allocation13 + $0x78] sm:$0xff]
        %1045 = vmatprep.subr.mxu0 0.0
        %1046 = vmatpush1.msra.mxu0 %v1029
        %1047 = vmatprep.subr.mxu0 0.0
        %1048 = vmatpush1.msra.mxu0 %v1030
        %1049 = vmatprep.subr.mxu0 0.0
        %1050 = vmatpush1.msra.mxu0 %v1031
        %1051 = vmatprep.subr.mxu0 0.0
        %1052 = vmatpush1.msra.mxu0 %v1032
        %1053 = vmatprep.subr.mxu0 0.0
        %1054 = vmatpush1.msra.mxu0 %v1033
        %1055 = vmatprep.subr.mxu0 0.0
        %1056 = vmatpush1.msra.mxu0 %v1034
        %1057 = vmatprep.subr.mxu0 0.0
        %1058 = vmatpush1.msra.mxu0 %v1035
        %1059 = vmatprep.subr.mxu0 0.0
        %1060 = vmatpush1.msra.mxu0 %v1036
        %1061 = vmatprep.subr.mxu0 0.0
        %1062 = vmatpush1.msra.mxu0 %v1037
        %1063 = vmatprep.subr.mxu0 0.0
        %1064 = vmatpush1.msra.mxu0 %v1038
        %1065 = vmatprep.subr.mxu0 0.0
        %1066 = vmatpush1.msra.mxu0 %v1039
        %1067 = vmatprep.subr.mxu0 0.0
        %1068 = vmatpush1.msra.mxu0 %v1040
        %1069 = vmatprep.subr.mxu0 0.0
        %1070 = vmatpush1.msra.mxu0 %v1041
        %1071 = vmatprep.subr.mxu0 0.0
        %1072 = vmatpush1.msra.mxu0 %v1042
        %1073 = vmatprep.subr.mxu0 0.0
        %1074 = vmatpush1.msra.mxu0 %v1043
        %1075 = vmatprep.subr.mxu0 0.0
        %1076 = vmatpush1.msra.mxu0 %v1044
        %1077 = vmatprep.subr.mxu0 0.0
        %1078 = vmatpush1.msra.mxu0 0.0
        %1079 = vmatprep.subr.mxu0 0.0
        %1080 = vmatpush1.msra.mxu0 0.0
        %1081 = vmatprep.subr.mxu0 0.0
        %1082 = vmatpush1.msra.mxu0 0.0
        %1083 = vmatprep.subr.mxu0 0.0
        %1084 = vmatpush1.msra.mxu0 0.0
        %1085 = vmatprep.subr.mxu0 0.0
        %1086 = vmatpush1.msra.mxu0 0.0
        %1087 = vmatprep.subr.mxu0 0.0
        %1088 = vmatpush1.msra.mxu0 0.0
        %1089 = vmatprep.subr.mxu0 0.0
        %1090 = vmatpush1.msra.mxu0 0.0
        %1091 = vmatprep.subr.mxu0 0.0
        %1092 = vmatpush1.msra.mxu0 0.0
        %1093 = vmatprep.subr.mxu0 0.0
        %1094 = vmatpush1.msra.mxu0 0.0
        %1095 = vmatprep.subr.mxu0 0.0
        %1096 = vmatpush1.msra.mxu0 0.0
        %1097 = vmatprep.subr.mxu0 0.0
        %1098 = vmatpush1.msra.mxu0 0.0
        %1099 = vmatprep.subr.mxu0 0.0
        %1100 = vmatpush1.msra.mxu0 0.0
        %1101 = vmatprep.subr.mxu0 0.0
        %1102 = vmatpush1.msra.mxu0 0.0
        %1103 = vmatprep.subr.mxu0 0.0
        %1104 = vmatpush1.msra.mxu0 0.0
        %1105 = vmatprep.subr.mxu0 0.0
        %1106 = vmatpush1.msra.mxu0 0.0
        %1107 = vmatprep.subr.mxu0 0.0
        %1108 = vmatpush1.msra.mxu0 0.0
        %1109 = vmatprep.mubr.f32.mxu0 0.0
        %1110 = vmatmul.mubr.f32.gmra.mrb[0].mxu0 %v554
        %v1111 = vpop.f32.mrb[0].mxu0
        %v1112 = vadd.f32 0.0, %v1111
        %v1113 = vpop.f32.mrb[0].mxu0
        %1114 = vdwg.mxu0
        %v1115 = vadd.f32 %v1026, %v1112
        %v1116 = vld [vmem:[#allocation15] sm:$0xff]
        %v1117 = vld [vmem:[#allocation15 + $0x8] sm:$0xff]
        %v1118 = vld [vmem:[#allocation15 + $0x10] sm:$0xff]
        %v1119 = vld [vmem:[#allocation15 + $0x18] sm:$0xff]
        %v1120 = vld [vmem:[#allocation15 + $0x20] sm:$0xff]
        %v1121 = vld [vmem:[#allocation15 + $0x28] sm:$0xff]
        %v1122 = vld [vmem:[#allocation15 + $0x30] sm:$0xff]
        %v1123 = vld [vmem:[#allocation15 + $0x38] sm:$0xff]
        %v1124 = vld [vmem:[#allocation15 + $0x40] sm:$0xff]
        %v1125 = vld [vmem:[#allocation15 + $0x48] sm:$0xff]
        %v1126 = vld [vmem:[#allocation15 + $0x50] sm:$0xff]
        %v1127 = vld [vmem:[#allocation15 + $0x58] sm:$0xff]
        %v1128 = vld [vmem:[#allocation15 + $0x60] sm:$0xff]
        %v1129 = vld [vmem:[#allocation15 + $0x68] sm:$0xff]
        %v1130 = vld [vmem:[#allocation15 + $0x70] sm:$0xff]
        %v1131 = vld [vmem:[#allocation15 + $0x78] sm:$0xff]
        %v1132 = vld [vmem:[%s9] sm:$0x1]
        %v1134 = vlaneseq
        %v1135 = vshrl.u32 %v1134, 7
        %v1136 = vsub.s32 0, %v1135
        %v1137 = vrot.slane %v1132, %v1136
        %1139 = vmatprep.subr.mxu0 0.0
        %1140 = vmatpush1.msra.mxu0 %v1116
        %1141 = vmatprep.subr.mxu0 0.0
        %1142 = vmatpush1.msra.mxu0 %v1117
        %1143 = vmatprep.subr.mxu0 0.0
        %1144 = vmatpush1.msra.mxu0 %v1118
        %1145 = vmatprep.subr.mxu0 0.0
        %1146 = vmatpush1.msra.mxu0 %v1119
        %1147 = vmatprep.subr.mxu0 0.0
        %1148 = vmatpush1.msra.mxu0 %v1120
        %1149 = vmatprep.subr.mxu0 0.0
        %1150 = vmatpush1.msra.mxu0 %v1121
        %1151 = vmatprep.subr.mxu0 0.0
        %1152 = vmatpush1.msra.mxu0 %v1122
        %1153 = vmatprep.subr.mxu0 0.0
        %1154 = vmatpush1.msra.mxu0 %v1123
        %1155 = vmatprep.subr.mxu0 0.0
        %1156 = vmatpush1.msra.mxu0 %v1124
        %1157 = vmatprep.subr.mxu0 0.0
        %1158 = vmatpush1.msra.mxu0 %v1125
        %1159 = vmatprep.subr.mxu0 0.0
        %1160 = vmatpush1.msra.mxu0 %v1126
        %1161 = vmatprep.subr.mxu0 0.0
        %1162 = vmatpush1.msra.mxu0 %v1127
        %1163 = vmatprep.subr.mxu0 0.0
        %1164 = vmatpush1.msra.mxu0 %v1128
        %1165 = vmatprep.subr.mxu0 0.0
        %1166 = vmatpush1.msra.mxu0 %v1129
        %1167 = vmatprep.subr.mxu0 0.0
        %1168 = vmatpush1.msra.mxu0 %v1130
        %1169 = vmatprep.subr.mxu0 0.0
        %1170 = vmatpush1.msra.mxu0 %v1131
        %1171 = vmatprep.subr.mxu0 0.0
        %1172 = vmatpush1.msra.mxu0 0.0
        %1173 = vmatprep.subr.mxu0 0.0
        %1174 = vmatpush1.msra.mxu0 0.0
        %1175 = vmatprep.subr.mxu0 0.0
        %1176 = vmatpush1.msra.mxu0 0.0
        %1177 = vmatprep.subr.mxu0 0.0
        %1178 = vmatpush1.msra.mxu0 0.0
        %1179 = vmatprep.subr.mxu0 0.0
        %1180 = vmatpush1.msra.mxu0 0.0
        %1181 = vmatprep.subr.mxu0 0.0
        %1182 = vmatpush1.msra.mxu0 0.0
        %1183 = vmatprep.subr.mxu0 0.0
        %1184 = vmatpush1.msra.mxu0 0.0
        %1185 = vmatprep.subr.mxu0 0.0
        %1186 = vmatpush1.msra.mxu0 0.0
        %1187 = vmatprep.subr.mxu0 0.0
        %1188 = vmatpush1.msra.mxu0 0.0
        %1189 = vmatprep.subr.mxu0 0.0
        %1190 = vmatpush1.msra.mxu0 0.0
        %1191 = vmatprep.subr.mxu0 0.0
        %1192 = vmatpush1.msra.mxu0 0.0
        %1193 = vmatprep.subr.mxu0 0.0
        %1194 = vmatpush1.msra.mxu0 0.0
        %1195 = vmatprep.subr.mxu0 0.0
        %1196 = vmatpush1.msra.mxu0 0.0
        %1197 = vmatprep.subr.mxu0 0.0
        %1198 = vmatpush1.msra.mxu0 0.0
        %1199 = vmatprep.subr.mxu0 0.0
        %1200 = vmatpush1.msra.mxu0 0.0
        %1201 = vmatprep.subr.mxu0 0.0
        %1202 = vmatpush1.msra.mxu0 0.0
        %1203 = vmatprep.mubr.f32.mxu0 0.0
        %1204 = vmatmul.mubr.f32.gmra.mrb[0].mxu0 %v1115
        %v1205 = vpop.f32.mrb[0].mxu0
        %v1206 = vadd.f32 %v1137, %v1205
        %v1207 = vpop.f32.mrb[0].mxu0
        %1208 = vdwg.mxu0
        %v1209 = vmax.f32 %v1206, 0.0
        %v1210 = vld [vmem:[#allocation16] sm:$0xff]
        %v1211 = vld [vmem:[#allocation16 + $0x8] sm:$0xff]
        %v1212 = vld [vmem:[#allocation16 + $0x10] sm:$0xff]
        %v1213 = vld [vmem:[#allocation16 + $0x18] sm:$0xff]
        %v1214 = vld [vmem:[#allocation16 + $0x20] sm:$0xff]
        %v1215 = vld [vmem:[#allocation16 + $0x28] sm:$0xff]
        %v1216 = vld [vmem:[#allocation16 + $0x30] sm:$0xff]
        %v1217 = vld [vmem:[#allocation16 + $0x38] sm:$0xff]
        %v1218 = vld [vmem:[#allocation16 + $0x40] sm:$0xff]
        %v1219 = vld [vmem:[#allocation16 + $0x48] sm:$0xff]
        %v1220 = vld [vmem:[#allocation16 + $0x50] sm:$0xff]
        %v1221 = vld [vmem:[#allocation16 + $0x58] sm:$0xff]
        %v1222 = vld [vmem:[#allocation16 + $0x60] sm:$0xff]
        %v1223 = vld [vmem:[#allocation16 + $0x68] sm:$0xff]
        %v1224 = vld [vmem:[#allocation16 + $0x70] sm:$0xff]
        %v1225 = vld [vmem:[#allocation16 + $0x78] sm:$0xff]
        %v1226 = vld [vmem:[%s11] sm:$0x1]
        %v1228 = vlaneseq
        %v1229 = vshrl.u32 %v1228, 7
        %v1230 = vsub.s32 0, %v1229
        %v1231 = vrot.slane %v1226, %v1230
        %1233 = vmatprep.subr.mxu0 0.0
        %1234 = vmatpush1.msra.mxu0 %v1210
        %1235 = vmatprep.subr.mxu0 0.0
        %1236 = vmatpush1.msra.mxu0 %v1211
        %1237 = vmatprep.subr.mxu0 0.0
        %1238 = vmatpush1.msra.mxu0 %v1212
        %1239 = vmatprep.subr.mxu0 0.0
        %1240 = vmatpush1.msra.mxu0 %v1213
        %1241 = vmatprep.subr.mxu0 0.0
        %1242 = vmatpush1.msra.mxu0 %v1214
        %1243 = vmatprep.subr.mxu0 0.0
        %1244 = vmatpush1.msra.mxu0 %v1215
        %1245 = vmatprep.subr.mxu0 0.0
        %1246 = vmatpush1.msra.mxu0 %v1216
        %1247 = vmatprep.subr.mxu0 0.0
        %1248 = vmatpush1.msra.mxu0 %v1217
        %1249 = vmatprep.subr.mxu0 0.0
        %1250 = vmatpush1.msra.mxu0 %v1218
        %1251 = vmatprep.subr.mxu0 0.0
        %1252 = vmatpush1.msra.mxu0 %v1219
        %1253 = vmatprep.subr.mxu0 0.0
        %1254 = vmatpush1.msra.mxu0 %v1220
        %1255 = vmatprep.subr.mxu0 0.0
        %1256 = vmatpush1.msra.mxu0 %v1221
        %1257 = vmatprep.subr.mxu0 0.0
        %1258 = vmatpush1.msra.mxu0 %v1222
        %1259 = vmatprep.subr.mxu0 0.0
        %1260 = vmatpush1.msra.mxu0 %v1223
        %1261 = vmatprep.subr.mxu0 0.0
        %1262 = vmatpush1.msra.mxu0 %v1224
        %1263 = vmatprep.subr.mxu0 0.0
        %1264 = vmatpush1.msra.mxu0 %v1225
        %1265 = vmatprep.subr.mxu0 0.0
        %1266 = vmatpush1.msra.mxu0 0.0
        %1267 = vmatprep.subr.mxu0 0.0
        %1268 = vmatpush1.msra.mxu0 0.0
        %1269 = vmatprep.subr.mxu0 0.0
        %1270 = vmatpush1.msra.mxu0 0.0
        %1271 = vmatprep.subr.mxu0 0.0
        %1272 = vmatpush1.msra.mxu0 0.0
        %1273 = vmatprep.subr.mxu0 0.0
        %1274 = vmatpush1.msra.mxu0 0.0
        %1275 = vmatprep.subr.mxu0 0.0
        %1276 = vmatpush1.msra.mxu0 0.0
        %1277 = vmatprep.subr.mxu0 0.0
        %1278 = vmatpush1.msra.mxu0 0.0
        %1279 = vmatprep.subr.mxu0 0.0
        %1280 = vmatpush1.msra.mxu0 0.0
        %1281 = vmatprep.subr.mxu0 0.0
        %1282 = vmatpush1.msra.mxu0 0.0
        %1283 = vmatprep.subr.mxu0 0.0
        %1284 = vmatpush1.msra.mxu0 0.0
        %1285 = vmatprep.subr.mxu0 0.0
        %1286 = vmatpush1.msra.mxu0 0.0
        %1287 = vmatprep.subr.mxu0 0.0
        %1288 = vmatpush1.msra.mxu0 0.0
        %1289 = vmatprep.subr.mxu0 0.0
        %1290 = vmatpush1.msra.mxu0 0.0
        %1291 = vmatprep.subr.mxu0 0.0
        %1292 = vmatpush1.msra.mxu0 0.0
        %1293 = vmatprep.subr.mxu0 0.0
        %1294 = vmatpush1.msra.mxu0 0.0
        %1295 = vmatprep.subr.mxu0 0.0
        %1296 = vmatpush1.msra.mxu0 0.0
        %1297 = vmatprep.mubr.f32.mxu0 0.0
        %1298 = vmatmul.mubr.f32.gmra.mrb[0].mxu0 %v1209
        %v1299 = vpop.f32.mrb[0].mxu0
        %v1300 = vadd.f32 %v1231, %v1299
        %v1301 = vpop.f32.mrb[0].mxu0
        %1302 = vdwg.mxu0
        %1303 = vst [vmem:[%s547] sm:$0xff] %v1300
        %s1304 = sand.u32 %s314, 1
        %s1305 = scalar_lea.sflag [#allocation6], %s1304
        %s1306 = sand.u32 %s314, 1
        %s1307 = smul.addr %s1306, 8
        %s1308 = scalar_lea.vmem [#allocation18], %s1307
        // Predicated region
        $region105: #{tpu_custom_call.1} parent=67 // pred_check
          %p1309 = pneg %p324
        $region106: #{tpu_custom_call.1} parent=67 // pred_check_branch
          %1311 = sbr.rel (%p1309) target = $region108
        $region107: #{tpu_custom_call.1} parent=67 // pred_region
          %s1313 = ssub.s32 128, 128
          %1314 = vsyncadd %s1305, %s1313
          %s1315 = sadd.s32 %s38, %s37
          %s1316 = smul.addr %s1315, 128
          %s1317 = scalar_lea.hbm %s12, %s1316
          %s1319 = sshll.u32 %s1308, 4
          %s1320 = int_to_ptr.vmem [resolvable:$true] %s1319
          %1322 = dma.vmem_to_hbm [thread:$0]  %s1320, 128, %s1317, %s1305
        $region108: #{tpu_custom_call.1} parent=67 // pred_fallthru
          _
      $region68: #{tpu_custom_call.1} parent=5 // pred_fallthru
        _
      %p1323 = scmp.le.s32.totalorder 2, %s28
      // Predicated region
      $region109: #{tpu_custom_call.1} parent=5 // pred_check
        %p1324 = pneg %p1323
      $region110: #{tpu_custom_call.1} parent=5 // pred_check_branch
        %1326 = sbr.rel (%p1324) target = $region112
      $region111: #{tpu_custom_call.1} parent=5 // pred_region
        %s1327 = ssub.s32 %s28, 2
        // Predicated region
        $region113: #{tpu_custom_call.1} parent=111 // pred_check
          %p1328 = pneg %p330
        $region114: #{tpu_custom_call.1} parent=111 // pred_check_branch
          %1330 = sbr.rel (%p1328) target = $region116
        $region115: #{tpu_custom_call.1} parent=111 // pred_region
          %s1331 = sand.u32 %s315, 1
          %s1332 = scalar_lea.sflag [#allocation6], %s1331
          %s1333 = sand.u32 %s315, 1
          %s1334 = smul.addr %s1333, 8
          %s1335 = scalar_lea.vmem [#allocation18], %s1334
          %1336 = dma.done %s1332, 128
        $region116: #{tpu_custom_call.1} parent=111 // pred_fallthru
          _
      $region112: #{tpu_custom_call.1} parent=5 // pred_fallthru
        _
    $region6: #{tpu_custom_call.1} parent=1 // loop_footer
      %s32 = sadd.s32 1, %s28
    $region7: #{tpu_custom_call.1} parent=1 // loop_footer_branch
      %27 = sbr.rel target = $region3
    $region8: #{tpu_custom_call.1} parent=1 // loop_exit
      _
    %1337 = vsyncpa [#allocation5], 1
    %s1338 = scalar_lea.sflag [#allocation5], 1
    %1339 = vsyncpa %s1338, 1
    %1340 = vsyncpa [#allocation8], 1
    %1341 = vsyncpa [#allocation11], 1
    %1342 = vsyncpa [#allocation14], 1
    %1343 = vsyncpa [#allocation17], 1
    %1344 = vsyncpa [#allocation6], 1
    %s1345 = scalar_lea.sflag [#allocation6], 1
    %1346 = vsyncpa %s1345, 1

</llo_original>
